<compile_context>
chip_gen: v7x
topology: tpu7x:2x2x1
jax: 0.10.0
libtpu: 0.0.40
codegen_flags: <defaults>
</compile_context>

<pallas_src>
import math

import jax
import jax.numpy as jnp
from jax.experimental import pallas as pl
from jax.experimental.pallas import tpu as pltpu


# ----------------------------------------------------------------------------
# Constant spatial operators (built once in the wrapper; applied on the MXU).
# ----------------------------------------------------------------------------
def _sel_matrices(n):
    """S_k[o, i] = 1 iff o == 2*i - 1 + k  (ConvTranspose2d k=3, s=2, p=1, op=1)."""
    mats = []
    for k in range(3):
        m = [[0.0] * n for _ in range(2 * n)]
        for i in range(n):
            o = 2 * i - 1 + k
            if 0 <= o < 2 * n:
                m[o][i] = 1.0
        mats.append(m)
    return jnp.array(mats, jnp.float32)            # (3, 2n, n)


def _bilinear_matrix(n):
    """A[o, i]: x2 bilinear upsample, align_corners=True (out = A @ in)."""
    out = 2 * n
    m = [[0.0] * n for _ in range(out)]
    for o in range(out):
        src = o * (n - 1) / (out - 1)
        i0 = int(math.floor(src))
        i1 = min(i0 + 1, n - 1)
        f = src - i0
        m[o][i0] += 1.0 - f
        m[o][i1] += f
    return jnp.array(m, jnp.float32)               # (2n, n)


# ----------------------------------------------------------------------------
# Fused kernel: deconv + bilinear upsample + 1x1 conv + BN, one batch / step.
# ----------------------------------------------------------------------------
def _uplg_kernel(x_ref, r_ref, l_ref, out_ref):
    # x_ref  : (1, C*H, W)       f32   input block (cast to bf16 in-kernel)
    # r_ref  : (4, W, 2W)        bf16  column operators [Aw^T, S0^T, S1^T, S2^T]
    # l_ref  : (4, O*2H, C*H+1)  bf16  row operators w/ deconv, proj, BN, biases folded
    # out_ref: (1, O*2H, 2W)     f32   final output (free reshape to (O,2H,2W) outside)
    W = x_ref.shape[2]
    # Extra ones row carries the folded bias through the k=0 matmul
    # (bilinear rows sum to 1, so ones @ Aw^T == ones).
    xe = jnp.concatenate(
        [x_ref[0].astype(jnp.bfloat16), jnp.ones((1, W), jnp.bfloat16)],
        axis=0)                                                    # (C*H+1, W)

    acc = None
    for k in range(4):                                             # static unroll
        t = jnp.dot(xe, r_ref[k],
                    preferred_element_type=jnp.float32)            # (C*H+1, 2W)
        d = jnp.dot(l_ref[k], t.astype(jnp.bfloat16),
                    preferred_element_type=jnp.float32)            # (O*2H, 2W)
        acc = d if acc is None else acc + d
    out_ref[0] = acc


# ----------------------------------------------------------------------------
# Wrapper
# ----------------------------------------------------------------------------
def uplg_query_forward(x, params):
    N, C, H, W = x.shape
    O = params["w_proj"].shape[0]
    H2, W2 = 2 * H, 2 * W
    eps = 1e-5
    hp = jax.lax.Precision.HIGHEST

    sh = _sel_matrices(H)                                          # (3, 2H, H)
    sw = _sel_matrices(W)                                          # (3, 2W, W)
    ah = _bilinear_matrix(H)                                       # (2H, H)
    aw = _bilinear_matrix(W)                                       # (2W, W)

    # Column (W-side) operators, applied as  x(C*H, W) @ r_k(W, 2W).
    rmat = jnp.stack([aw.T, sw[0].T, sw[1].T, sw[2].T], axis=0)    # (4, W, 2W)

    # Fold BatchNorm (inference) + conv / deconv biases into the 1x1 projection.
    # TODO(synk): training-mode batch statistics are not computed in-kernel.
    scale = params["gamma"] * jax.lax.rsqrt(params["var"] + eps)   # (O,)
    wp_f = scale[:, None] * params["w_proj"]                       # (O, C)
    b_f = (scale * (params["b_proj"]
                    + jnp.dot(params["w_proj"], params["b_local"], precision=hp)
                    - params["mean"]) + params["beta"])            # (O,)

    # Row (H-side) operators with depthwise deconv weights and projection folded
    # in (Kronecker-style), so the whole module is 8 channel-batched matmuls.
    wl = params["w_local"].reshape(C, 3, 3)                        # (C, kh, kw)
    big_a = jnp.einsum("oc,gh->ogch", wp_f, ah).reshape(O * H2, C * H)
    t_kw = jnp.einsum("cuv,ugh->vcgh", wl, sh, precision=hp)       # (kw, C, 2H, H)
    big_m = jnp.einsum("oc,vcgh->vogch", wp_f, t_kw,
                       precision=hp).reshape(3, O * H2, C * H)

    bias_col = jnp.repeat(b_f, H2)[:, None]                        # (O*2H, 1)
    zero_col = jnp.zeros((3, O * H2, 1), jnp.float32)
    lmat = jnp.concatenate(
        [jnp.concatenate([big_a[None], big_m], axis=0),            # (4, O*2H, C*H)
         jnp.concatenate([bias_col[None], zero_col], axis=0)],     # (4, O*2H, 1)
        axis=2)                                                    # (4, O*2H, C*H+1)

    xf = x.reshape(N, C * H, W)          # free row-major view; stays f32 (cast in kernel)

    out_flat = pl.pallas_call(
        _uplg_kernel,
        out_shape=jax.ShapeDtypeStruct((N, O * H2, W2), jnp.float32),
        grid_spec=pltpu.PrefetchScalarGridSpec(
            num_scalar_prefetch=0,
            grid=(N,),
            in_specs=[
                pl.BlockSpec((1, C * H, W), lambda n: (n, 0, 0)),
                pl.BlockSpec((4, W, W2), lambda n: (0, 0, 0)),
                pl.BlockSpec((4, O * H2, C * H + 1), lambda n: (0, 0, 0)),
            ],
            out_specs=pl.BlockSpec((1, O * H2, W2), lambda n: (n, 0, 0)),
        ),
        compiler_params=pltpu.CompilerParams(
            dimension_semantics=("parallel",),
            vmem_limit_bytes=32 * 1024 * 1024,
        ),
    )(xf, rmat.astype(jnp.bfloat16), lmat.astype(jnp.bfloat16))

    # Free row-major reshape back to NCHW.
    return out_flat.reshape(N, O, H2, W2)


uplg_query_forward = jax.jit(uplg_query_forward)


# ----------------------------------------------------------------------------
# Deterministic parameter init (matches PyTorch module's parameter shapes)
# ----------------------------------------------------------------------------
def init_params(key, in_dim, out_dim):
    ks = jax.random.split(key, 8)
    return {
        "w_local": 0.2 * jax.random.normal(ks[0], (in_dim, 1, 3, 3), jnp.float32),
        "b_local": 0.1 * jax.random.normal(ks[1], (in_dim,), jnp.float32),
        "w_proj": 0.3 * jax.random.normal(ks[2], (out_dim, in_dim), jnp.float32),
        "b_proj": 0.1 * jax.random.normal(ks[3], (out_dim,), jnp.float32),
        "gamma": 1.0 + 0.1 * jax.random.normal(ks[4], (out_dim,), jnp.float32),
        "beta": 0.05 * jax.random.normal(ks[5], (out_dim,), jnp.float32),
        "mean": 0.1 * jax.random.normal(ks[6], (out_dim,), jnp.float32),
        "var": 0.5 + 0.5 * jnp.abs(jax.random.normal(ks[7], (out_dim,), jnp.float32)),
    }


# ----------------------------------------------------------------------------
# Pure-JAX f32 reference (independent formulation) for a correctness check
# ----------------------------------------------------------------------------
def reference_forward(x, p):
    N, C, H, W = x.shape
    hp = jax.lax.Precision.HIGHEST
    # depthwise ConvTranspose2d(k=3, s=2, p=1, op=1) == lhs-dilated conv w/ flipped kernel
    wf = p["w_local"][:, :, ::-1, ::-1]
    local = jax.lax.conv_general_dilated(
        x, wf, window_strides=(1, 1), padding=[(1, 2), (1, 2)],
        lhs_dilation=(2, 2), rhs_dilation=(1, 1),
        dimension_numbers=("NCHW", "OIHW", "NCHW"),
        feature_group_count=C, precision=hp)
    local = local + p["b_local"][None, :, None, None]

    def interp(n):
        i = jnp.arange(2 * n, dtype=jnp.float32)
        src = i * (n - 1) / (2 * n - 1)
        i0 = jnp.floor(src).astype(jnp.int32)
        i1 = jnp.minimum(i0 + 1, n - 1)
        return i0, i1, src - i0.astype(jnp.float32)

    h0, h1, fh = interp(H)
    w0, w1, fw = interp(W)
    xh = (x[:, :, h0, :] * (1 - fh)[None, None, :, None]
          + x[:, :, h1, :] * fh[None, None, :, None])
    pool = (xh[:, :, :, w0] * (1 - fw)[None, None, None, :]
            + xh[:, :, :, w1] * fw[None, None, None, :])

    q = local + pool
    y = jnp.einsum("oc,nchw->nohw", p["w_proj"], q, precision=hp)
    y = y + p["b_proj"][None, :, None, None]
    eps = 1e-5
    y = ((y - p["mean"][None, :, None, None])
         / jnp.sqrt(p["var"][None, :, None, None] + eps)
         * p["gamma"][None, :, None, None] + p["beta"][None, :, None, None])
    return y


if __name__ == "__main__":
    N, C, O, H, W = 2, 4, 8, 16, 16          # in_dim=4, out_dim=8, 16x16 -> 32x32
    key = jax.random.PRNGKey(0)
    kx, kp = jax.random.split(key)
    x = jax.random.normal(kx, (N, C, H, W), jnp.float32)
    params = init_params(kp, C, O)

    out = jax.block_until_ready(uplg_query_forward(x, params))
    assert out.shape == (N, O, 2 * H, 2 * W)

    ref = jax.block_until_ready(reference_forward(x, params))
    # bf16 matmul operands with f32 accumulation vs an all-f32 reference.
    if not bool(jnp.allclose(out, ref, rtol=4e-2, atol=4e-2)):
        raise AssertionError("Pallas kernel output mismatch vs reference")

    print("KERNEL_OK")
</pallas_src>

<mosaic_0001>
module attributes {stable_mosaic.version = 11 : i64} {
  func.func @_uplg_kernel(%arg0: i32, %arg1: memref<1x64x16xf32, #tpu.memory_space<vmem>>, %arg2: memref<4x16x32xbf16, #tpu.memory_space<vmem>>, %arg3: memref<4x256x65xbf16, #tpu.memory_space<vmem>>, %arg4: memref<1x256x32xf32, #tpu.memory_space<vmem>>) attributes {dimension_semantics = [#tpu.dimension_semantics<parallel>], iteration_bounds = array<i64: 2>, scalar_prefetch = 0 : i64, scratch_operands = 0 : i64, tpu.core_type = #tpu.core_type<tc>, window_params = [{transform_indices = @transform_0, window_bounds = array<i64: 1, 64, 16>}, {pipeline_mode = #tpu.pipeline_mode<synchronous>, transform_indices = @transform_1, window_bounds = array<i64: 4, 16, 32>}, {pipeline_mode = #tpu.pipeline_mode<synchronous>, transform_indices = @transform_2, window_bounds = array<i64: 4, 256, 65>}, {transform_indices = @transform_3, window_bounds = array<i64: 1, 256, 32>}]} {
    %c0 = arith.constant 0 : index
    %c0_0 = arith.constant 0 : index
    %c0_1 = arith.constant 0 : index
    %0 = vector.load %arg1[%c0, %c0_0, %c0_1] : memref<1x64x16xf32, #tpu.memory_space<vmem>>, vector<1x64x16xf32>
    %1 = vector.shape_cast %0 : vector<1x64x16xf32> to vector<64x16xf32>
    %2 = arith.truncf %1 : vector<64x16xf32> to vector<64x16xbf16>
    %cst = arith.constant 1.000000e+00 : bf16
    %3 = vector.broadcast %cst : bf16 to vector<1x16xbf16>
    %4 = tpu.concatenate %2, %3 in 0 : vector<64x16xbf16>, vector<1x16xbf16> -> vector<65x16xbf16>
    %c0_2 = arith.constant 0 : index
    %c0_3 = arith.constant 0 : index
    %c0_4 = arith.constant 0 : index
    %5 = vector.load %arg2[%c0_2, %c0_3, %c0_4] : memref<4x16x32xbf16, #tpu.memory_space<vmem>>, vector<1x16x32xbf16>
    %6 = vector.shape_cast %5 : vector<1x16x32xbf16> to vector<16x32xbf16>
    %cst_5 = arith.constant dense<0.000000e+00> : vector<65x32xf32>
    %7 = tpu.matmul %4, %6, %cst_5 {dimension_numbers = #tpu.dot_dimension_numbers<[1], [0], [0], [1], [0, 0, 1, 1], [], []>} : vector<65x16xbf16>, vector<16x32xbf16>, vector<65x32xf32> -> vector<65x32xf32>
    %c0_6 = arith.constant 0 : index
    %c0_7 = arith.constant 0 : index
    %c0_8 = arith.constant 0 : index
    %8 = vector.load %arg3[%c0_6, %c0_7, %c0_8] : memref<4x256x65xbf16, #tpu.memory_space<vmem>>, vector<1x256x65xbf16>
    %9 = vector.shape_cast %8 : vector<1x256x65xbf16> to vector<256x65xbf16>
    %10 = arith.truncf %7 : vector<65x32xf32> to vector<65x32xbf16>
    %cst_9 = arith.constant dense<0.000000e+00> : vector<256x32xf32>
    %11 = tpu.matmul %9, %10, %cst_9 {dimension_numbers = #tpu.dot_dimension_numbers<[1], [0], [0], [1], [0, 0, 1, 1], [], []>} : vector<256x65xbf16>, vector<65x32xbf16>, vector<256x32xf32> -> vector<256x32xf32>
    %c1 = arith.constant 1 : index
    %c0_10 = arith.constant 0 : index
    %c0_11 = arith.constant 0 : index
    %12 = vector.load %arg2[%c1, %c0_10, %c0_11] : memref<4x16x32xbf16, #tpu.memory_space<vmem>>, vector<1x16x32xbf16>
    %13 = vector.shape_cast %12 : vector<1x16x32xbf16> to vector<16x32xbf16>
    %cst_12 = arith.constant dense<0.000000e+00> : vector<65x32xf32>
    %14 = tpu.matmul %4, %13, %cst_12 {dimension_numbers = #tpu.dot_dimension_numbers<[1], [0], [0], [1], [0, 0, 1, 1], [], []>} : vector<65x16xbf16>, vector<16x32xbf16>, vector<65x32xf32> -> vector<65x32xf32>
    %c1_13 = arith.constant 1 : index
    %c0_14 = arith.constant 0 : index
    %c0_15 = arith.constant 0 : index
    %15 = vector.load %arg3[%c1_13, %c0_14, %c0_15] : memref<4x256x65xbf16, #tpu.memory_space<vmem>>, vector<1x256x65xbf16>
    %16 = vector.shape_cast %15 : vector<1x256x65xbf16> to vector<256x65xbf16>
    %17 = arith.truncf %14 : vector<65x32xf32> to vector<65x32xbf16>
    %cst_16 = arith.constant dense<0.000000e+00> : vector<256x32xf32>
    %18 = tpu.matmul %16, %17, %cst_16 {dimension_numbers = #tpu.dot_dimension_numbers<[1], [0], [0], [1], [0, 0, 1, 1], [], []>} : vector<256x65xbf16>, vector<65x32xbf16>, vector<256x32xf32> -> vector<256x32xf32>
    %19 = arith.addf %11, %18 : vector<256x32xf32>
    %c2 = arith.constant 2 : index
    %c0_17 = arith.constant 0 : index
    %c0_18 = arith.constant 0 : index
    %20 = vector.load %arg2[%c2, %c0_17, %c0_18] : memref<4x16x32xbf16, #tpu.memory_space<vmem>>, vector<1x16x32xbf16>
    %21 = vector.shape_cast %20 : vector<1x16x32xbf16> to vector<16x32xbf16>
    %cst_19 = arith.constant dense<0.000000e+00> : vector<65x32xf32>
    %22 = tpu.matmul %4, %21, %cst_19 {dimension_numbers = #tpu.dot_dimension_numbers<[1], [0], [0], [1], [0, 0, 1, 1], [], []>} : vector<65x16xbf16>, vector<16x32xbf16>, vector<65x32xf32> -> vector<65x32xf32>
    %c2_20 = arith.constant 2 : index
    %c0_21 = arith.constant 0 : index
    %c0_22 = arith.constant 0 : index
    %23 = vector.load %arg3[%c2_20, %c0_21, %c0_22] : memref<4x256x65xbf16, #tpu.memory_space<vmem>>, vector<1x256x65xbf16>
    %24 = vector.shape_cast %23 : vector<1x256x65xbf16> to vector<256x65xbf16>
    %25 = arith.truncf %22 : vector<65x32xf32> to vector<65x32xbf16>
    %cst_23 = arith.constant dense<0.000000e+00> : vector<256x32xf32>
    %26 = tpu.matmul %24, %25, %cst_23 {dimension_numbers = #tpu.dot_dimension_numbers<[1], [0], [0], [1], [0, 0, 1, 1], [], []>} : vector<256x65xbf16>, vector<65x32xbf16>, vector<256x32xf32> -> vector<256x32xf32>
    %27 = arith.addf %19, %26 : vector<256x32xf32>
    %c3 = arith.constant 3 : index
    %c0_24 = arith.constant 0 : index
    %c0_25 = arith.constant 0 : index
    %28 = vector.load %arg2[%c3, %c0_24, %c0_25] : memref<4x16x32xbf16, #tpu.memory_space<vmem>>, vector<1x16x32xbf16>
    %29 = vector.shape_cast %28 : vector<1x16x32xbf16> to vector<16x32xbf16>
    %cst_26 = arith.constant dense<0.000000e+00> : vector<65x32xf32>
    %30 = tpu.matmul %4, %29, %cst_26 {dimension_numbers = #tpu.dot_dimension_numbers<[1], [0], [0], [1], [0, 0, 1, 1], [], []>} : vector<65x16xbf16>, vector<16x32xbf16>, vector<65x32xf32> -> vector<65x32xf32>
    %c3_27 = arith.constant 3 : index
    %c0_28 = arith.constant 0 : index
    %c0_29 = arith.constant 0 : index
    %31 = vector.load %arg3[%c3_27, %c0_28, %c0_29] : memref<4x256x65xbf16, #tpu.memory_space<vmem>>, vector<1x256x65xbf16>
    %32 = vector.shape_cast %31 : vector<1x256x65xbf16> to vector<256x65xbf16>
    %33 = arith.truncf %30 : vector<65x32xf32> to vector<65x32xbf16>
    %cst_30 = arith.constant dense<0.000000e+00> : vector<256x32xf32>
    %34 = tpu.matmul %32, %33, %cst_30 {dimension_numbers = #tpu.dot_dimension_numbers<[1], [0], [0], [1], [0, 0, 1, 1], [], []>} : vector<256x65xbf16>, vector<65x32xbf16>, vector<256x32xf32> -> vector<256x32xf32>
    %35 = arith.addf %27, %34 : vector<256x32xf32>
    %c0_31 = arith.constant 0 : index
    %c0_32 = arith.constant 0 : index
    %c0_33 = arith.constant 0 : index
    %36 = vector.load %arg4[%c0_31, %c0_32, %c0_33] : memref<1x256x32xf32, #tpu.memory_space<vmem>>, vector<1x256x32xf32>
    %37 = vector.shape_cast %36 : vector<1x256x32xf32> to vector<256x32xf32>
    %38 = vector.shape_cast %35 : vector<256x32xf32> to vector<1x256x32xf32>
    tpu.vector_store %arg4[%c0_31, %c0_32, %c0_33], %38 {strides = array<i32>} : memref<1x256x32xf32, #tpu.memory_space<vmem>>, vector<1x256x32xf32>,
    return
  }
  func.func @transform_0(%arg0: i32) -> (i32, i32, i32) {
    %c0_i32 = arith.constant 0 : i32
    %c0_i32_0 = arith.constant 0 : i32
    %c0_i32_1 = arith.constant 0 : i32
    return %arg0, %c0_i32, %c0_i32_0 : i32, i32, i32
  }
  func.func @transform_1(%arg0: i32) -> (i32, i32, i32) {
    %c0_i32 = arith.constant 0 : i32
    %c0_i32_0 = arith.constant 0 : i32
    %c0_i32_1 = arith.constant 0 : i32
    %c0_i32_2 = arith.constant 0 : i32
    return %c0_i32, %c0_i32_0, %c0_i32_1 : i32, i32, i32
  }
  func.func @transform_2(%arg0: i32) -> (i32, i32, i32) {
    %c0_i32 = arith.constant 0 : i32
    %c0_i32_0 = arith.constant 0 : i32
    %c0_i32_1 = arith.constant 0 : i32
    %c0_i32_2 = arith.constant 0 : i32
    return %c0_i32, %c0_i32_0, %c0_i32_1 : i32, i32, i32
  }
  func.func @transform_3(%arg0: i32) -> (i32, i32, i32) {
    %c0_i32 = arith.constant 0 : i32
    %c0_i32_0 = arith.constant 0 : i32
    %c0_i32_1 = arith.constant 0 : i32
    return %arg0, %c0_i32, %c0_i32_0 : i32, i32, i32
  }
}

</mosaic_0001>

<llo_original>
// kernel: uplg_query_forward.1
$region0: #{uplg_query_forward.1}
  #allocation0 [shape = 'u32[]', space=smem, size = 0x4, offset = 0x4, fixed_abs, tag = 'smem constant byte address 0x4 - core index']
  #allocation1 [shape = 'u32[144,128]{1,0:T(1,128)}', space=vmem, size = 0x12000, scoped, tag = 'internal scratch']
  %s0 = inlined_call_operand.vmem [shape: f32[2,64,16], index: 0, kind: input, shape index: {}]
  %s1 = inlined_call_operand.vmem [shape: bf16[4,16,32], index: 1, kind: input, shape index: {}]
  %s2 = inlined_call_operand.vmem [shape: bf16[4,256,65], index: 2, kind: input, shape index: {}]
  %s3 = inlined_call_operand.hbm [shape: f32[2,256,32], index: 3, kind: output, shape index: {}]
  %s4 = sld [smem:[#allocation0]]
  $region45: #{uplg_query_forward.1} parent=0
    _
  %s6 = ssub.s32 1, %s4
  %s7 = scalar_select 0, %s6, %s4
  $region1: #{uplg_query_forward.1} parent=0
    #allocation2 [shape = 'u8[262144]{0}', space=vmem, size = 0x40000, scoped, tag = 'output window, operand 0']
    #allocation3 [shape = 's32[2]{0}', space=sflag, size = 0x8, scoped, tag = 'scoped memory for uplg_query_forward.1']
    %8 = vsyncpa [#allocation3], 0
    %s9 = scalar_lea.sflag [#allocation3], 1
    %10 = vsyncpa %s9, 0
    loop: start=0, step=1, limit=4
    $region2: #{uplg_query_forward.1} parent=1 // loop_pre_header
      _
    $region3: #{uplg_query_forward.1} parent=1 // loop_header
      %s12 = sphi 0, %s16
      %p13 = scmp.ge.s32.totalorder %s12, 4
      %s22 = sphi 0, %s24
      %s25 = sphi 0, %s22
      %s26 = sphi 0, %s25
      %s42 = sphi 0, %s26
      %s46 = sphi 0, %s46
      %s48 = sphi 0, %s46
      %s49 = sphi 0, %s48
      %s63 = sphi 0, %s49
      %s67 = sphi 0, %s67
      %s69 = sphi 0, %s67
      %s70 = sphi 0, %s69
      %s84 = sphi 0, %s70
      %s90 = sphi 0, %s92
      %s93 = sphi 0, %s90
      %s94 = sphi 0, %s93
      %s110 = sphi 0, %s94
    $region4: #{uplg_query_forward.1} parent=1 // loop_header_branch
      %15 = sbr.rel (%p13) target = $region8
    $region5: #{uplg_query_forward.1} parent=1 // loop_body
      %s17 = ssub.s32 %s12, 1
      %s18 = ssub.s32 %s12, 2
      %s19 = sadd.s32 %s12, 1
      %s20 = ssub.s32 %s12, %s19
      %p21 = scmp.eq.s32.totalorder %s20, 0
      %s23 = sadd.s32 %s22, 1
      %s24 = scalar_select %p21, %s22, %s23
      %p27 = pneg %p21
      %p28 = scmp.eq.s32.totalorder %s12, 1
      %p29 = por %p27, %p28
      %p30 = scmp.ne.s32.totalorder %s22, %s25
      %p31 = scmp.eq.s32.totalorder %s12, 0
      %p32 = por %p30, %p31
      %p33 = scmp.ne.s32.totalorder %s22, %s25
      %p34 = scmp.eq.s32.totalorder %s17, 1
      %p35 = por %p33, %p34
      %p36 = scmp.ne.s32.totalorder %s25, %s26
      %p37 = scmp.eq.s32.totalorder %s17, 0
      %p38 = por %p36, %p37
      %p39 = scmp.ne.s32.totalorder %s25, %s26
      %p40 = scmp.eq.s32.totalorder %s18, 1
      %p41 = por %p39, %p40
      %p43 = scmp.ne.s32.totalorder %s26, %s42
      %p44 = scmp.eq.s32.totalorder %s18, 0
      %p45 = por %p43, %p44
      %s47 = sadd.s32 %s46, 1
      %p50 = scmp.eq.s32.totalorder %s12, 1
      %p51 = scmp.ne.s32.totalorder %s46, %s48
      %p52 = scmp.eq.s32.totalorder %s12, 0
      %p53 = por %p51, %p52
      %p54 = scmp.ne.s32.totalorder %s46, %s48
      %p55 = scmp.eq.s32.totalorder %s17, 1
      %p56 = por %p54, %p55
      %p57 = scmp.ne.s32.totalorder %s48, %s49
      %p58 = scmp.eq.s32.totalorder %s17, 0
      %p59 = por %p57, %p58
      %p60 = scmp.ne.s32.totalorder %s48, %s49
      %p61 = scmp.eq.s32.totalorder %s18, 1
      %p62 = por %p60, %p61
      %p64 = scmp.ne.s32.totalorder %s49, %s63
      %p65 = scmp.eq.s32.totalorder %s18, 0
      %p66 = por %p64, %p65
      %s68 = sadd.s32 %s67, 1
      %p71 = scmp.eq.s32.totalorder %s12, 1
      %p72 = scmp.ne.s32.totalorder %s67, %s69
      %p73 = scmp.eq.s32.totalorder %s12, 0
      %p74 = por %p72, %p73
      %p75 = scmp.ne.s32.totalorder %s67, %s69
      %p76 = scmp.eq.s32.totalorder %s17, 1
      %p77 = por %p75, %p76
      %p78 = scmp.ne.s32.totalorder %s69, %s70
      %p79 = scmp.eq.s32.totalorder %s17, 0
      %p80 = por %p78, %p79
      %p81 = scmp.ne.s32.totalorder %s69, %s70
      %p82 = scmp.eq.s32.totalorder %s18, 1
      %p83 = por %p81, %p82
      %p85 = scmp.ne.s32.totalorder %s70, %s84
      %p86 = scmp.eq.s32.totalorder %s18, 0
      %p87 = por %p85, %p86
      %s88 = ssub.s32 %s12, %s19
      %p89 = scmp.eq.s32.totalorder %s88, 0
      %s91 = sadd.s32 %s90, 1
      %s92 = scalar_select %p89, %s90, %s91
      %p95 = pneg %p89
      %p96 = scmp.eq.s32.totalorder %s12, 1
      %p97 = por %p95, %p96
      %p98 = scmp.ne.s32.totalorder %s90, %s93
      %p99 = scmp.eq.s32.totalorder %s12, 0
      %p100 = por %p98, %p99
      %p101 = scmp.ne.s32.totalorder %s90, %s93
      %p102 = scmp.eq.s32.totalorder %s17, 1
      %p103 = por %p101, %p102
      %p104 = scmp.ne.s32.totalorder %s93, %s94
      %p105 = scmp.eq.s32.totalorder %s17, 0
      %p106 = por %p104, %p105
      %p107 = scmp.ne.s32.totalorder %s93, %s94
      %p108 = scmp.eq.s32.totalorder %s18, 1
      %p109 = por %p107, %p108
      %p111 = scmp.ne.s32.totalorder %s94, %s110
      %p112 = scmp.eq.s32.totalorder %s18, 0
      %p113 = por %p111, %p112
      %p114 = scmp.le.s32.totalorder 1, %s12
      %p115 = scmp.lt.s32.totalorder %s12, 3
      %p116 = pnand %p114, %p115
      %p117 = pneg %p116
      // Predicated region
      $region9: #{uplg_query_forward.1} parent=5 // pred_check
        _
      $region10: #{uplg_query_forward.1} parent=5 // pred_check_branch
        %119 = sbr.rel (%p116) target = $region12
      $region11: #{uplg_query_forward.1} parent=5 // pred_region
        %s120 = ssub.s32 %s12, 1
        // Predicated region
        $region13: #{uplg_query_forward.1} parent=11 // pred_check
          %p121 = pneg %p59
        $region14: #{uplg_query_forward.1} parent=11 // pred_check_branch
          %123 = sbr.rel (%p121) target = $region16
        $region15: #{uplg_query_forward.1} parent=11 // pred_region
          _
        $region16: #{uplg_query_forward.1} parent=11 // pred_fallthru
          _
        // Predicated region
        $region17: #{uplg_query_forward.1} parent=11 // pred_check
          %p124 = pneg %p80
        $region18: #{uplg_query_forward.1} parent=11 // pred_check_branch
          %126 = sbr.rel (%p124) target = $region20
        $region19: #{uplg_query_forward.1} parent=11 // pred_region
          _
        $region20: #{uplg_query_forward.1} parent=11 // pred_fallthru
          _
      $region12: #{uplg_query_forward.1} parent=5 // pred_fallthru
        _
      %p127 = scmp.lt.s32.totalorder %s12, 2
      // Predicated region
      $region21: #{uplg_query_forward.1} parent=5 // pred_check
        %p128 = pneg %p127
      $region22: #{uplg_query_forward.1} parent=5 // pred_check_branch
        %130 = sbr.rel (%p128) target = $region24
      $region23: #{uplg_query_forward.1} parent=5 // pred_region
        // Predicated region
        $region25: #{uplg_query_forward.1} parent=23 // pred_check
          %p131 = pneg %p32
        $region26: #{uplg_query_forward.1} parent=23 // pred_check_branch
          %133 = sbr.rel (%p131) target = $region28
        $region27: #{uplg_query_forward.1} parent=23 // pred_region
          %p134 = scmp.lt.s32.totalorder %s12, 1
          %s135 = scalar_select %p134, %s12, 1
          %s136 = smul.addr %s135, 8
          %s137 = smul.addr %s136, 8
          %s138 = scalar_lea.vmem %s0, %s137
        $region28: #{uplg_query_forward.1} parent=23 // pred_fallthru
          _
      $region24: #{uplg_query_forward.1} parent=5 // pred_fallthru
        _
      %p139 = scmp.le.s32.totalorder 1, %s12
      %p140 = scmp.lt.s32.totalorder %s12, 3
      %p141 = pnand %p139, %p140
      %p142 = pneg %p141
      // Predicated region
      $region29: #{uplg_query_forward.1} parent=5 // pred_check
        _
      $region30: #{uplg_query_forward.1} parent=5 // pred_check_branch
        %144 = sbr.rel (%p141) target = $region32
      $region31: #{uplg_query_forward.1} parent=5 // pred_region
        %s145 = ssub.s32 %s12, 1
        %p146 = scmp.lt.s32.totalorder %s17, 1
        %s147 = scalar_select %p146, %s17, 1
        %s148 = smul.addr %s147, 8
        %s149 = smul.addr %s148, 8
        %s150 = scalar_lea.vmem %s0, %s149
        %p151 = pneg %p38
        %p152 = pneg %p35
        %p153 = pneg %p59
        %p154 = pneg %p56
        %p155 = pneg %p80
        %p156 = pneg %p77
        %p157 = pneg %p106
        %p158 = pneg %p103
        %s159 = sand.u32 %s93, 1
        %s160 = scalar_lea.sflag [#allocation3], %s159
        %s161 = sand.u32 %s93, 1
        %s162 = smul.addr %s161, 256
        %s163 = scalar_lea.vmem [#allocation2], %s162
        %p164 = scmp.lt.s32.totalorder %s17, 1
        %s165 = scalar_select %p164, %s17, 1
        %s166 = smul.addr %s165, 8
        %s167 = smul.addr %s166, 8
        %s168 = scalar_lea.vmem %s0, %s167
        %v171 = vld [vmem:[%s168] sm:$0xff]
        %v172 = vld [vmem:[%s168 + $0x8] sm:$0xff]
        %v173 = vld [vmem:[%s168 + $0x10] sm:$0xff]
        %v174 = vld [vmem:[%s168 + $0x18] sm:$0xff]
        %v175 = vld [vmem:[%s168 + $0x20] sm:$0xff]
        %v176 = vld [vmem:[%s168 + $0x28] sm:$0xff]
        %v177 = vld [vmem:[%s168 + $0x30] sm:$0xff]
        %v178 = vld [vmem:[%s168 + $0x38] sm:$0xff]
        %v179 = vpack.c.bf16 %v172, %v171
        %v180 = vpack.c.bf16 %v174, %v173
        %v181 = vpack.c.bf16 %v176, %v175
        %v182 = vpack.c.bf16 %v178, %v177
        %v183 = vld [vmem:[%s1] sm:$0xf]
        %v184 = vld [vmem:[%s1 + $0x4] sm:$0xf]
        %v187 = vunpack.c.l.b16 %v183
        %v188 = vunpack.c.l.b16 %v184
        %v189 = vpack.c.b16 %v188, %v187
        %vm191 = vcmask 130048
        %v193 = vsel %vm191, %v179, 0
        %v196 = vsel %vm191, %v180, 0
        %v199 = vsel %vm191, %v181, 0
        %v202 = vsel %vm191, %v182, 0
        %v205 = vsel %vm191, 1065369472, 0
        %207 = vmatprep.subr.bf16.mxu0 0
        %208 = vmatpush1.bf16.msra.mxu0 %v189
        %209 = vmatprep.subr.bf16.mxu0 0
        %210 = vmatpush1.bf16.msra.mxu0 0
        %211 = vmatprep.subr.bf16.mxu0 0
        %212 = vmatpush1.bf16.msra.mxu0 0
        %213 = vmatprep.subr.bf16.mxu0 0
        %214 = vmatpush1.bf16.msra.mxu0 0
        %215 = vmatprep.subr.bf16.mxu0 0
        %216 = vmatpush1.bf16.msra.mxu0 0
        %217 = vmatprep.subr.bf16.mxu0 0
        %218 = vmatpush1.bf16.msra.mxu0 0
        %219 = vmatprep.subr.bf16.mxu0 0
        %220 = vmatpush1.bf16.msra.mxu0 0
        %221 = vmatprep.subr.bf16.mxu0 0
        %222 = vmatpush1.bf16.msra.mxu0 0
        %223 = vmatprep.subr.bf16.mxu0 0
        %224 = vmatpush1.bf16.msra.mxu0 0
        %225 = vmatprep.subr.bf16.mxu0 0
        %226 = vmatpush1.bf16.msra.mxu0 0
        %227 = vmatprep.subr.bf16.mxu0 0
        %228 = vmatpush1.bf16.msra.mxu0 0
        %229 = vmatprep.subr.bf16.mxu0 0
        %230 = vmatpush1.bf16.msra.mxu0 0
        %231 = vmatprep.subr.bf16.mxu0 0
        %232 = vmatpush1.bf16.msra.mxu0 0
        %233 = vmatprep.subr.bf16.mxu0 0
        %234 = vmatpush1.bf16.msra.mxu0 0
        %235 = vmatprep.subr.bf16.mxu0 0
        %236 = vmatpush1.bf16.msra.mxu0 0
        %237 = vmatprep.subr.bf16.mxu0 0
        %238 = vmatpush1.bf16.msra.mxu0 0
        %239 = vmatprep.mubr.bf16.mxu0 0
        %240 = vmatmul.mubr.bf16.gmra.mrb[0].mxu0 %v193
        %v241 = vpop.f32.mrb[0].mxu0
        %v242 = vadd.f32 0.0, %v241
        %v243 = vpop.f32.mrb[0].mxu0
        %v244 = vpop.f32.mrb[0].mxu0
        %v245 = vadd.f32 0.0, %v244
        %v246 = vpop.f32.mrb[0].mxu0
        %247 = vmatprep.mubr.bf16.mxu0 0
        %248 = vmatmul.mubr.bf16.gmra.mrb[0].mxu0 %v196
        %v249 = vpop.f32.mrb[0].mxu0
        %v250 = vadd.f32 0.0, %v249
        %v251 = vpop.f32.mrb[0].mxu0
        %v252 = vpop.f32.mrb[0].mxu0
        %v253 = vadd.f32 0.0, %v252
        %v254 = vpop.f32.mrb[0].mxu0
        %255 = vmatprep.mubr.bf16.mxu0 0
        %256 = vmatmul.mubr.bf16.gmra.mrb[0].mxu0 %v199
        %v257 = vpop.f32.mrb[0].mxu0
        %v258 = vadd.f32 0.0, %v257
        %v259 = vpop.f32.mrb[0].mxu0
        %v260 = vpop.f32.mrb[0].mxu0
        %v261 = vadd.f32 0.0, %v260
        %v262 = vpop.f32.mrb[0].mxu0
        %263 = vmatprep.mubr.bf16.mxu0 0
        %264 = vmatmul.mubr.bf16.gmra.mrb[0].mxu0 %v202
        %v265 = vpop.f32.mrb[0].mxu0
        %v266 = vadd.f32 0.0, %v265
        %v267 = vpop.f32.mrb[0].mxu0
        %v268 = vpop.f32.mrb[0].mxu0
        %v269 = vadd.f32 0.0, %v268
        %v270 = vpop.f32.mrb[0].mxu0
        %271 = vmatprep.mubr.bf16.mxu0 0
        %272 = vmatmul.mubr.bf16.gmra.mrb[0].mxu0 %v205
        %v273 = vpop.f32.mrb[0].mxu0
        %v274 = vadd.f32 0.0, %v273
        %v275 = vpop.f32.mrb[0].mxu0
        %v276 = vpop.f32.mrb[0].mxu0
        %v277 = vpop.f32.mrb[0].mxu0
        %278 = vdwg.mxu0
        %v279 = vld [vmem:[%s2] sm:$0xf]
        %v280 = vld [vmem:[%s2 + $0x4] sm:$0xf]
        %v281 = vld [vmem:[%s2 + $0x8] sm:$0xf]
        %v282 = vld [vmem:[%s2 + $0xc] sm:$0xf]
        %v283 = vld [vmem:[%s2 + $0x10] sm:$0xf]
        %v284 = vld [vmem:[%s2 + $0x14] sm:$0xf]
        %v285 = vld [vmem:[%s2 + $0x18] sm:$0xf]
        %v286 = vld [vmem:[%s2 + $0x1c] sm:$0xf]
        %v287 = vld [vmem:[%s2 + $0x20] sm:$0xf]
        %v288 = vld [vmem:[%s2 + $0x24] sm:$0xf]
        %v289 = vld [vmem:[%s2 + $0x28] sm:$0xf]
        %v290 = vld [vmem:[%s2 + $0x2c] sm:$0xf]
        %v291 = vld [vmem:[%s2 + $0x30] sm:$0xf]
        %v292 = vld [vmem:[%s2 + $0x34] sm:$0xf]
        %v293 = vld [vmem:[%s2 + $0x38] sm:$0xf]
        %v294 = vld [vmem:[%s2 + $0x3c] sm:$0xf]
        %v295 = vld [vmem:[%s2 + $0x40] sm:$0xf]
        %v296 = vld [vmem:[%s2 + $0x44] sm:$0xf]
        %v297 = vld [vmem:[%s2 + $0x48] sm:$0xf]
        %v298 = vld [vmem:[%s2 + $0x4c] sm:$0xf]
        %v299 = vld [vmem:[%s2 + $0x50] sm:$0xf]
        %v300 = vld [vmem:[%s2 + $0x54] sm:$0xf]
        %v301 = vld [vmem:[%s2 + $0x58] sm:$0xf]
        %v302 = vld [vmem:[%s2 + $0x5c] sm:$0xf]
        %v303 = vld [vmem:[%s2 + $0x60] sm:$0xf]
        %v304 = vld [vmem:[%s2 + $0x64] sm:$0xf]
        %v305 = vld [vmem:[%s2 + $0x68] sm:$0xf]
        %v306 = vld [vmem:[%s2 + $0x6c] sm:$0xf]
        %v307 = vld [vmem:[%s2 + $0x70] sm:$0xf]
        %v308 = vld [vmem:[%s2 + $0x74] sm:$0xf]
        %v309 = vld [vmem:[%s2 + $0x78] sm:$0xf]
        %v310 = vld [vmem:[%s2 + $0x7c] sm:$0xf]
        %v311 = vpack.c.bf16 %v245, %v242
        %v312 = vpack.c.bf16 %v253, %v250
        %v313 = vpack.c.bf16 %v261, %v258
        %v314 = vpack.c.bf16 %v269, %v266
        %v315 = vpack.c.bf16 %v274, %v274
        %s316 = scalar_lea.vmem %s1, 8
        %v317 = vld [vmem:[%s316] sm:$0xf]
        %v318 = vld [vmem:[%s316 + $0x4] sm:$0xf]
        %v321 = vunpack.c.l.b16 %v317
        %v322 = vunpack.c.l.b16 %v318
        %v323 = vpack.c.b16 %v322, %v321
        %325 = vmatprep.subr.bf16.mxu0 0
        %326 = vmatpush1.bf16.msra.mxu0 %v323
        %327 = vmatprep.subr.bf16.mxu0 0
        %328 = vmatpush1.bf16.msra.mxu0 0
        %329 = vmatprep.subr.bf16.mxu0 0
        %330 = vmatpush1.bf16.msra.mxu0 0
        %331 = vmatprep.subr.bf16.mxu0 0
        %332 = vmatpush1.bf16.msra.mxu0 0
        %333 = vmatprep.subr.bf16.mxu0 0
        %334 = vmatpush1.bf16.msra.mxu0 0
        %335 = vmatprep.subr.bf16.mxu0 0
        %336 = vmatpush1.bf16.msra.mxu0 0
        %337 = vmatprep.subr.bf16.mxu0 0
        %338 = vmatpush1.bf16.msra.mxu0 0
        %339 = vmatprep.subr.bf16.mxu0 0
        %340 = vmatpush1.bf16.msra.mxu0 0
        %341 = vmatprep.subr.bf16.mxu0 0
        %342 = vmatpush1.bf16.msra.mxu0 0
        %343 = vmatprep.subr.bf16.mxu0 0
        %344 = vmatpush1.bf16.msra.mxu0 0
        %345 = vmatprep.subr.bf16.mxu0 0
        %346 = vmatpush1.bf16.msra.mxu0 0
        %347 = vmatprep.subr.bf16.mxu0 0
        %348 = vmatpush1.bf16.msra.mxu0 0
        %349 = vmatprep.subr.bf16.mxu0 0
        %350 = vmatpush1.bf16.msra.mxu0 0
        %351 = vmatprep.subr.bf16.mxu0 0
        %352 = vmatpush1.bf16.msra.mxu0 0
        %353 = vmatprep.subr.bf16.mxu0 0
        %354 = vmatpush1.bf16.msra.mxu0 0
        %355 = vmatprep.subr.bf16.mxu0 0
        %356 = vmatpush1.bf16.msra.mxu0 0
        %357 = vmatprep.mubr.bf16.mxu0 0
        %358 = vmatmul.mubr.bf16.gmra.mrb[0].mxu0 %v193
        %v359 = vpop.f32.mrb[0].mxu0
        %v360 = vadd.f32 0.0, %v359
        %v361 = vpop.f32.mrb[0].mxu0
        %v362 = vpop.f32.mrb[0].mxu0
        %v363 = vadd.f32 0.0, %v362
        %v364 = vpop.f32.mrb[0].mxu0
        %365 = vmatprep.mubr.bf16.mxu0 0
        %366 = vmatmul.mubr.bf16.gmra.mrb[0].mxu0 %v196
        %v367 = vpop.f32.mrb[0].mxu0
        %v368 = vadd.f32 0.0, %v367
        %v369 = vpop.f32.mrb[0].mxu0
        %v370 = vpop.f32.mrb[0].mxu0
        %v371 = vadd.f32 0.0, %v370
        %v372 = vpop.f32.mrb[0].mxu0
        %373 = vmatprep.mubr.bf16.mxu0 0
        %374 = vmatmul.mubr.bf16.gmra.mrb[0].mxu0 %v199
        %v375 = vpop.f32.mrb[0].mxu0
        %v376 = vadd.f32 0.0, %v375
        %v377 = vpop.f32.mrb[0].mxu0
        %v378 = vpop.f32.mrb[0].mxu0
        %v379 = vadd.f32 0.0, %v378
        %v380 = vpop.f32.mrb[0].mxu0
        %381 = vmatprep.mubr.bf16.mxu0 0
        %382 = vmatmul.mubr.bf16.gmra.mrb[0].mxu0 %v202
        %v383 = vpop.f32.mrb[0].mxu0
        %v384 = vadd.f32 0.0, %v383
        %v385 = vpop.f32.mrb[0].mxu0
        %v386 = vpop.f32.mrb[0].mxu0
        %v387 = vadd.f32 0.0, %v386
        %v388 = vpop.f32.mrb[0].mxu0
        %389 = vmatprep.mubr.bf16.mxu0 0
        %390 = vmatmul.mubr.bf16.gmra.mrb[0].mxu0 %v205
        %v391 = vpop.f32.mrb[0].mxu0
        %v392 = vadd.f32 0.0, %v391
        %v393 = vpop.f32.mrb[0].mxu0
        %v394 = vpop.f32.mrb[0].mxu0
        %v395 = vpop.f32.mrb[0].mxu0
        %396 = vdwg.mxu0
        %s397 = scalar_lea.vmem %s2, 128
        %v398 = vld [vmem:[%s397] sm:$0xf]
        %v399 = vld [vmem:[%s397 + $0x4] sm:$0xf]
        %v400 = vld [vmem:[%s397 + $0x8] sm:$0xf]
        %v401 = vld [vmem:[%s397 + $0xc] sm:$0xf]
        %v402 = vld [vmem:[%s397 + $0x10] sm:$0xf]
        %v403 = vld [vmem:[%s397 + $0x14] sm:$0xf]
        %v404 = vld [vmem:[%s397 + $0x18] sm:$0xf]
        %v405 = vld [vmem:[%s397 + $0x1c] sm:$0xf]
        %v406 = vld [vmem:[%s397 + $0x20] sm:$0xf]
        %v407 = vld [vmem:[%s397 + $0x24] sm:$0xf]
        %v408 = vld [vmem:[%s397 + $0x28] sm:$0xf]
        %v409 = vld [vmem:[%s397 + $0x2c] sm:$0xf]
        %v410 = vld [vmem:[%s397 + $0x30] sm:$0xf]
        %v411 = vld [vmem:[%s397 + $0x34] sm:$0xf]
        %v412 = vld [vmem:[%s397 + $0x38] sm:$0xf]
        %v413 = vld [vmem:[%s397 + $0x3c] sm:$0xf]
        %v414 = vld [vmem:[%s397 + $0x40] sm:$0xf]
        %v415 = vld [vmem:[%s397 + $0x44] sm:$0xf]
        %v416 = vld [vmem:[%s397 + $0x48] sm:$0xf]
        %v417 = vld [vmem:[%s397 + $0x4c] sm:$0xf]
        %v418 = vld [vmem:[%s397 + $0x50] sm:$0xf]
        %v419 = vld [vmem:[%s397 + $0x54] sm:$0xf]
        %v420 = vld [vmem:[%s397 + $0x58] sm:$0xf]
        %v421 = vld [vmem:[%s397 + $0x5c] sm:$0xf]
        %v422 = vld [vmem:[%s397 + $0x60] sm:$0xf]
        %v423 = vld [vmem:[%s397 + $0x64] sm:$0xf]
        %v424 = vld [vmem:[%s397 + $0x68] sm:$0xf]
        %v425 = vld [vmem:[%s397 + $0x6c] sm:$0xf]
        %v426 = vld [vmem:[%s397 + $0x70] sm:$0xf]
        %v427 = vld [vmem:[%s397 + $0x74] sm:$0xf]
        %v428 = vld [vmem:[%s397 + $0x78] sm:$0xf]
        %v429 = vld [vmem:[%s397 + $0x7c] sm:$0xf]
        %v430 = vpack.c.bf16 %v363, %v360
        %v431 = vpack.c.bf16 %v371, %v368
        %v432 = vpack.c.bf16 %v379, %v376
        %v433 = vpack.c.bf16 %v387, %v384
        %v434 = vpack.c.bf16 %v392, %v392
        %v467 = vunpack.c.l.b16 %v398
        %v468 = vunpack.c.l.b16 %v399
        %v469 = vunpack.c.l.b16 %v400
        %v470 = vunpack.c.l.b16 %v401
        %v471 = vunpack.c.l.b16 %v402
        %v472 = vunpack.c.l.b16 %v403
        %v473 = vunpack.c.l.b16 %v404
        %v474 = vunpack.c.l.b16 %v405
        %v475 = vunpack.c.l.b16 %v406
        %v476 = vunpack.c.l.b16 %v407
        %v477 = vunpack.c.l.b16 %v408
        %v478 = vunpack.c.l.b16 %v409
        %v479 = vunpack.c.l.b16 %v410
        %v480 = vunpack.c.l.b16 %v411
        %v481 = vunpack.c.l.b16 %v412
        %v482 = vunpack.c.l.b16 %v413
        %v483 = vunpack.c.l.b16 %v414
        %v484 = vunpack.c.l.b16 %v415
        %v485 = vunpack.c.l.b16 %v416
        %v486 = vunpack.c.l.b16 %v417
        %v487 = vunpack.c.l.b16 %v418
        %v488 = vunpack.c.l.b16 %v419
        %v489 = vunpack.c.l.b16 %v420
        %v490 = vunpack.c.l.b16 %v421
        %v491 = vunpack.c.l.b16 %v422
        %v492 = vunpack.c.l.b16 %v423
        %v493 = vunpack.c.l.b16 %v424
        %v494 = vunpack.c.l.b16 %v425
        %v495 = vunpack.c.l.b16 %v426
        %v496 = vunpack.c.l.b16 %v427
        %v497 = vunpack.c.l.b16 %v428
        %v498 = vunpack.c.l.b16 %v429
        %v499 = vpack.c.b16 %v468, %v467
        %v500 = vpack.c.b16 %v470, %v469
        %v501 = vpack.c.b16 %v472, %v471
        %v502 = vpack.c.b16 %v474, %v473
        %v503 = vpack.c.b16 %v476, %v475
        %v504 = vpack.c.b16 %v478, %v477
        %v505 = vpack.c.b16 %v480, %v479
        %v506 = vpack.c.b16 %v482, %v481
        %v507 = vpack.c.b16 %v484, %v483
        %v508 = vpack.c.b16 %v486, %v485
        %v509 = vpack.c.b16 %v488, %v487
        %v510 = vpack.c.b16 %v490, %v489
        %v511 = vpack.c.b16 %v492, %v491
        %v512 = vpack.c.b16 %v494, %v493
        %v513 = vpack.c.b16 %v496, %v495
        %v514 = vpack.c.b16 %v498, %v497
        %vm515 = vcmask 531456
        %v517 = vsel %vm515, %v499, 0
        %v520 = vsel %vm515, %v500, 0
        %v523 = vsel %vm515, %v501, 0
        %v526 = vsel %vm515, %v502, 0
        %v529 = vsel %vm515, %v503, 0
        %v532 = vsel %vm515, %v504, 0
        %v535 = vsel %vm515, %v505, 0
        %v538 = vsel %vm515, %v506, 0
        %v541 = vsel %vm515, %v507, 0
        %v544 = vsel %vm515, %v508, 0
        %v547 = vsel %vm515, %v509, 0
        %v550 = vsel %vm515, %v510, 0
        %v553 = vsel %vm515, %v511, 0
        %v556 = vsel %vm515, %v512, 0
        %v559 = vsel %vm515, %v513, 0
        %v562 = vsel %vm515, %v514, 0
        %vm564 = vcmask 1040384
        %v565 = vsel 0, 4294967295, 65535
        %v566 = vsel %vm564, %v565, 0
        %v568 = vand.u32 %v434, %v566
        %570 = vmatprep.subr.bf16.mxu0 0
        %571 = vmatpush1.bf16.msra.mxu0 %v430
        %572 = vmatprep.subr.bf16.mxu0 0
        %573 = vmatpush1.bf16.msra.mxu0 %v431
        %574 = vmatprep.subr.bf16.mxu0 0
        %575 = vmatpush1.bf16.msra.mxu0 %v432
        %576 = vmatprep.subr.bf16.mxu0 0
        %577 = vmatpush1.bf16.msra.mxu0 %v433
        %578 = vmatprep.subr.bf16.mxu0 0
        %579 = vmatpush1.bf16.msra.mxu0 %v568
        %580 = vmatprep.subr.bf16.mxu0 0
        %581 = vmatpush1.bf16.msra.mxu0 0
        %582 = vmatprep.subr.bf16.mxu0 0
        %583 = vmatpush1.bf16.msra.mxu0 0
        %584 = vmatprep.subr.bf16.mxu0 0
        %585 = vmatpush1.bf16.msra.mxu0 0
        %586 = vmatprep.subr.bf16.mxu0 0
        %587 = vmatpush1.bf16.msra.mxu0 0
        %588 = vmatprep.subr.bf16.mxu0 0
        %589 = vmatpush1.bf16.msra.mxu0 0
        %590 = vmatprep.subr.bf16.mxu0 0
        %591 = vmatpush1.bf16.msra.mxu0 0
        %592 = vmatprep.subr.bf16.mxu0 0
        %593 = vmatpush1.bf16.msra.mxu0 0
        %594 = vmatprep.subr.bf16.mxu0 0
        %595 = vmatpush1.bf16.msra.mxu0 0
        %596 = vmatprep.subr.bf16.mxu0 0
        %597 = vmatpush1.bf16.msra.mxu0 0
        %598 = vmatprep.subr.bf16.mxu0 0
        %599 = vmatpush1.bf16.msra.mxu0 0
        %600 = vmatprep.subr.bf16.mxu0 0
        %601 = vmatpush1.bf16.msra.mxu0 0
        %602 = vmatprep.mubr.bf16.mxu0 0
        %603 = vmatmul.mubr.bf16.gmra.mrb[0].mxu0 %v517
        %v604 = vpop.f32.mrb[0].mxu0
        %v605 = vadd.f32 0.0, %v604
        %v606 = vpop.f32.mrb[0].mxu0
        %v607 = vpop.f32.mrb[0].mxu0
        %v608 = vadd.f32 0.0, %v607
        %v609 = vpop.f32.mrb[0].mxu0
        %610 = vmatprep.mubr.bf16.mxu0 0
        %611 = vmatmul.mubr.bf16.gmra.mrb[0].mxu0 %v520
        %v612 = vpop.f32.mrb[0].mxu0
        %v613 = vadd.f32 0.0, %v612
        %v614 = vpop.f32.mrb[0].mxu0
        %v615 = vpop.f32.mrb[0].mxu0
        %v616 = vadd.f32 0.0, %v615
        %v617 = vpop.f32.mrb[0].mxu0
        %618 = vmatprep.mubr.bf16.mxu0 0
        %619 = vmatmul.mubr.bf16.gmra.mrb[0].mxu0 %v523
        %v620 = vpop.f32.mrb[0].mxu0
        %v621 = vadd.f32 0.0, %v620
        %v622 = vpop.f32.mrb[0].mxu0
        %v623 = vpop.f32.mrb[0].mxu0
        %v624 = vadd.f32 0.0, %v623
        %v625 = vpop.f32.mrb[0].mxu0
        %626 = vmatprep.mubr.bf16.mxu0 0
        %627 = vmatmul.mubr.bf16.gmra.mrb[0].mxu0 %v526
        %v628 = vpop.f32.mrb[0].mxu0
        %v629 = vadd.f32 0.0, %v628
        %v630 = vpop.f32.mrb[0].mxu0
        %v631 = vpop.f32.mrb[0].mxu0
        %v632 = vadd.f32 0.0, %v631
        %v633 = vpop.f32.mrb[0].mxu0
        %634 = vmatprep.mubr.bf16.mxu0 0
        %635 = vmatmul.mubr.bf16.gmra.mrb[0].mxu0 %v529
        %v636 = vpop.f32.mrb[0].mxu0
        %v637 = vadd.f32 0.0, %v636
        %v638 = vpop.f32.mrb[0].mxu0
        %v639 = vpop.f32.mrb[0].mxu0
        %v640 = vadd.f32 0.0, %v639
        %v641 = vpop.f32.mrb[0].mxu0
        %642 = vmatprep.mubr.bf16.mxu0 0
        %643 = vmatmul.mubr.bf16.gmra.mrb[0].mxu0 %v532
        %v644 = vpop.f32.mrb[0].mxu0
        %v645 = vadd.f32 0.0, %v644
        %v646 = vpop.f32.mrb[0].mxu0
        %v647 = vpop.f32.mrb[0].mxu0
        %v648 = vadd.f32 0.0, %v647
        %v649 = vpop.f32.mrb[0].mxu0
        %650 = vmatprep.mubr.bf16.mxu0 0
        %651 = vmatmul.mubr.bf16.gmra.mrb[0].mxu0 %v535
        %v652 = vpop.f32.mrb[0].mxu0
        %v653 = vadd.f32 0.0, %v652
        %v654 = vpop.f32.mrb[0].mxu0
        %v655 = vpop.f32.mrb[0].mxu0
        %v656 = vadd.f32 0.0, %v655
        %v657 = vpop.f32.mrb[0].mxu0
        %658 = vmatprep.mubr.bf16.mxu0 0
        %659 = vmatmul.mubr.bf16.gmra.mrb[0].mxu0 %v538
        %v660 = vpop.f32.mrb[0].mxu0
        %v661 = vadd.f32 0.0, %v660
        %v662 = vpop.f32.mrb[0].mxu0
        %v663 = vpop.f32.mrb[0].mxu0
        %v664 = vadd.f32 0.0, %v663
        %v665 = vpop.f32.mrb[0].mxu0
        %666 = vmatprep.mubr.bf16.mxu0 0
        %667 = vmatmul.mubr.bf16.gmra.mrb[0].mxu0 %v541
        %v668 = vpop.f32.mrb[0].mxu0
        %v669 = vadd.f32 0.0, %v668
        %v670 = vpop.f32.mrb[0].mxu0
        %v671 = vpop.f32.mrb[0].mxu0
        %v672 = vadd.f32 0.0, %v671
        %v673 = vpop.f32.mrb[0].mxu0
        %674 = vmatprep.mubr.bf16.mxu0 0
        %675 = vmatmul.mubr.bf16.gmra.mrb[0].mxu0 %v544
        %v676 = vpop.f32.mrb[0].mxu0
        %v677 = vadd.f32 0.0, %v676
        %v678 = vpop.f32.mrb[0].mxu0
        %v679 = vpop.f32.mrb[0].mxu0
        %v680 = vadd.f32 0.0, %v679
        %v681 = vpop.f32.mrb[0].mxu0
        %682 = vmatprep.mubr.bf16.mxu0 0
        %683 = vmatmul.mubr.bf16.gmra.mrb[0].mxu0 %v547
        %v684 = vpop.f32.mrb[0].mxu0
        %v685 = vadd.f32 0.0, %v684
        %v686 = vpop.f32.mrb[0].mxu0
        %v687 = vpop.f32.mrb[0].mxu0
        %v688 = vadd.f32 0.0, %v687
        %v689 = vpop.f32.mrb[0].mxu0
        %690 = vmatprep.mubr.bf16.mxu0 0
        %691 = vmatmul.mubr.bf16.gmra.mrb[0].mxu0 %v550
        %v692 = vpop.f32.mrb[0].mxu0
        %v693 = vadd.f32 0.0, %v692
        %v694 = vpop.f32.mrb[0].mxu0
        %v695 = vpop.f32.mrb[0].mxu0
        %v696 = vadd.f32 0.0, %v695
        %v697 = vpop.f32.mrb[0].mxu0
        %698 = vmatprep.mubr.bf16.mxu0 0
        %699 = vmatmul.mubr.bf16.gmra.mrb[0].mxu0 %v553
        %v700 = vpop.f32.mrb[0].mxu0
        %v701 = vadd.f32 0.0, %v700
        %v702 = vpop.f32.mrb[0].mxu0
        %v703 = vpop.f32.mrb[0].mxu0
        %v704 = vadd.f32 0.0, %v703
        %v705 = vpop.f32.mrb[0].mxu0
        %706 = vmatprep.mubr.bf16.mxu0 0
        %707 = vmatmul.mubr.bf16.gmra.mrb[0].mxu0 %v556
        %v708 = vpop.f32.mrb[0].mxu0
        %v709 = vadd.f32 0.0, %v708
        %v710 = vpop.f32.mrb[0].mxu0
        %v711 = vpop.f32.mrb[0].mxu0
        %v712 = vadd.f32 0.0, %v711
        %v713 = vpop.f32.mrb[0].mxu0
        %714 = vmatprep.mubr.bf16.mxu0 0
        %715 = vmatmul.mubr.bf16.gmra.mrb[0].mxu0 %v559
        %v716 = vpop.f32.mrb[0].mxu0
        %v717 = vadd.f32 0.0, %v716
        %v718 = vpop.f32.mrb[0].mxu0
        %v719 = vpop.f32.mrb[0].mxu0
        %v720 = vadd.f32 0.0, %v719
        %v721 = vpop.f32.mrb[0].mxu0
        %722 = vmatprep.mubr.bf16.mxu0 0
        %723 = vmatmul.mubr.bf16.gmra.mrb[0].mxu0 %v562
        %v724 = vpop.f32.mrb[0].mxu0
        %v725 = vadd.f32 0.0, %v724
        %v726 = vpop.f32.mrb[0].mxu0
        %v727 = vpop.f32.mrb[0].mxu0
        %v728 = vadd.f32 0.0, %v727
        %v729 = vpop.f32.mrb[0].mxu0
        %730 = vdwg.mxu0
        %v763 = vunpack.c.l.b16 %v279
        %v764 = vunpack.c.l.b16 %v280
        %v765 = vunpack.c.l.b16 %v281
        %v766 = vunpack.c.l.b16 %v282
        %v767 = vunpack.c.l.b16 %v283
        %v768 = vunpack.c.l.b16 %v284
        %v769 = vunpack.c.l.b16 %v285
        %v770 = vunpack.c.l.b16 %v286
        %v771 = vunpack.c.l.b16 %v287
        %v772 = vunpack.c.l.b16 %v288
        %v773 = vunpack.c.l.b16 %v289
        %v774 = vunpack.c.l.b16 %v290
        %v775 = vunpack.c.l.b16 %v291
        %v776 = vunpack.c.l.b16 %v292
        %v777 = vunpack.c.l.b16 %v293
        %v778 = vunpack.c.l.b16 %v294
        %v779 = vunpack.c.l.b16 %v295
        %v780 = vunpack.c.l.b16 %v296
        %v781 = vunpack.c.l.b16 %v297
        %v782 = vunpack.c.l.b16 %v298
        %v783 = vunpack.c.l.b16 %v299
        %v784 = vunpack.c.l.b16 %v300
        %v785 = vunpack.c.l.b16 %v301
        %v786 = vunpack.c.l.b16 %v302
        %v787 = vunpack.c.l.b16 %v303
        %v788 = vunpack.c.l.b16 %v304
        %v789 = vunpack.c.l.b16 %v305
        %v790 = vunpack.c.l.b16 %v306
        %v791 = vunpack.c.l.b16 %v307
        %v792 = vunpack.c.l.b16 %v308
        %v793 = vunpack.c.l.b16 %v309
        %v794 = vunpack.c.l.b16 %v310
        %v795 = vpack.c.b16 %v764, %v763
        %v796 = vpack.c.b16 %v766, %v765
        %v797 = vpack.c.b16 %v768, %v767
        %v798 = vpack.c.b16 %v770, %v769
        %v799 = vpack.c.b16 %v772, %v771
        %v800 = vpack.c.b16 %v774, %v773
        %v801 = vpack.c.b16 %v776, %v775
        %v802 = vpack.c.b16 %v778, %v777
        %v803 = vpack.c.b16 %v780, %v779
        %v804 = vpack.c.b16 %v782, %v781
        %v805 = vpack.c.b16 %v784, %v783
        %v806 = vpack.c.b16 %v786, %v785
        %v807 = vpack.c.b16 %v788, %v787
        %v808 = vpack.c.b16 %v790, %v789
        %v809 = vpack.c.b16 %v792, %v791
        %v810 = vpack.c.b16 %v794, %v793
        %v812 = vsel %vm515, %v795, 0
        %v815 = vsel %vm515, %v796, 0
        %v818 = vsel %vm515, %v797, 0
        %v821 = vsel %vm515, %v798, 0
        %v824 = vsel %vm515, %v799, 0
        %v827 = vsel %vm515, %v800, 0
        %v830 = vsel %vm515, %v801, 0
        %v833 = vsel %vm515, %v802, 0
        %v836 = vsel %vm515, %v803, 0
        %v839 = vsel %vm515, %v804, 0
        %v842 = vsel %vm515, %v805, 0
        %v845 = vsel %vm515, %v806, 0
        %v848 = vsel %vm515, %v807, 0
        %v851 = vsel %vm515, %v808, 0
        %v854 = vsel %vm515, %v809, 0
        %v857 = vsel %vm515, %v810, 0
        %v860 = vand.u32 %v315, %v566
        %862 = vmatprep.subr.bf16.mxu0 0
        %863 = vmatpush1.bf16.msra.mxu0 %v311
        %864 = vmatprep.subr.bf16.mxu0 0
        %865 = vmatpush1.bf16.msra.mxu0 %v312
        %866 = vmatprep.subr.bf16.mxu0 0
        %867 = vmatpush1.bf16.msra.mxu0 %v313
        %868 = vmatprep.subr.bf16.mxu0 0
        %869 = vmatpush1.bf16.msra.mxu0 %v314
        %870 = vmatprep.subr.bf16.mxu0 0
        %871 = vmatpush1.bf16.msra.mxu0 %v860
        %872 = vmatprep.subr.bf16.mxu0 0
        %873 = vmatpush1.bf16.msra.mxu0 0
        %874 = vmatprep.subr.bf16.mxu0 0
        %875 = vmatpush1.bf16.msra.mxu0 0
        %876 = vmatprep.subr.bf16.mxu0 0
        %877 = vmatpush1.bf16.msra.mxu0 0
        %878 = vmatprep.subr.bf16.mxu0 0
        %879 = vmatpush1.bf16.msra.mxu0 0
        %880 = vmatprep.subr.bf16.mxu0 0
        %881 = vmatpush1.bf16.msra.mxu0 0
        %882 = vmatprep.subr.bf16.mxu0 0
        %883 = vmatpush1.bf16.msra.mxu0 0
        %884 = vmatprep.subr.bf16.mxu0 0
        %885 = vmatpush1.bf16.msra.mxu0 0
        %886 = vmatprep.subr.bf16.mxu0 0
        %887 = vmatpush1.bf16.msra.mxu0 0
        %888 = vmatprep.subr.bf16.mxu0 0
        %889 = vmatpush1.bf16.msra.mxu0 0
        %890 = vmatprep.subr.bf16.mxu0 0
        %891 = vmatpush1.bf16.msra.mxu0 0
        %892 = vmatprep.subr.bf16.mxu0 0
        %893 = vmatpush1.bf16.msra.mxu0 0
        %894 = vmatprep.mubr.bf16.mxu0 0
        %895 = vmatmul.mubr.bf16.gmra.mrb[0].mxu0 %v812
        %v896 = vpop.f32.mrb[0].mxu0
        %v897 = vadd.f32 %v605, %v896
        %v898 = vpop.f32.mrb[0].mxu0
        %v899 = vpop.f32.mrb[0].mxu0
        %v900 = vadd.f32 %v608, %v899
        %v901 = vpop.f32.mrb[0].mxu0
        %902 = vmatprep.mubr.bf16.mxu0 0
        %903 = vmatmul.mubr.bf16.gmra.mrb[0].mxu0 %v815
        %v904 = vpop.f32.mrb[0].mxu0
        %v905 = vadd.f32 %v613, %v904
        %v906 = vpop.f32.mrb[0].mxu0
        %v907 = vpop.f32.mrb[0].mxu0
        %v908 = vadd.f32 %v616, %v907
        %v909 = vpop.f32.mrb[0].mxu0
        %910 = vmatprep.mubr.bf16.mxu0 0
        %911 = vmatmul.mubr.bf16.gmra.mrb[0].mxu0 %v818
        %v912 = vpop.f32.mrb[0].mxu0
        %v913 = vadd.f32 %v621, %v912
        %v914 = vpop.f32.mrb[0].mxu0
        %v915 = vpop.f32.mrb[0].mxu0
        %v916 = vadd.f32 %v624, %v915
        %v917 = vpop.f32.mrb[0].mxu0
        %918 = vmatprep.mubr.bf16.mxu0 0
        %919 = vmatmul.mubr.bf16.gmra.mrb[0].mxu0 %v821
        %v920 = vpop.f32.mrb[0].mxu0
        %v921 = vadd.f32 %v629, %v920
        %v922 = vpop.f32.mrb[0].mxu0
        %v923 = vpop.f32.mrb[0].mxu0
        %v924 = vadd.f32 %v632, %v923
        %v925 = vpop.f32.mrb[0].mxu0
        %926 = vmatprep.mubr.bf16.mxu0 0
        %927 = vmatmul.mubr.bf16.gmra.mrb[0].mxu0 %v824
        %v928 = vpop.f32.mrb[0].mxu0
        %v929 = vadd.f32 %v637, %v928
        %v930 = vpop.f32.mrb[0].mxu0
        %v931 = vpop.f32.mrb[0].mxu0
        %v932 = vadd.f32 %v640, %v931
        %v933 = vpop.f32.mrb[0].mxu0
        %934 = vmatprep.mubr.bf16.mxu0 0
        %935 = vmatmul.mubr.bf16.gmra.mrb[0].mxu0 %v827
        %v936 = vpop.f32.mrb[0].mxu0
        %v937 = vadd.f32 %v645, %v936
        %v938 = vpop.f32.mrb[0].mxu0
        %v939 = vpop.f32.mrb[0].mxu0
        %v940 = vadd.f32 %v648, %v939
        %v941 = vpop.f32.mrb[0].mxu0
        %942 = vmatprep.mubr.bf16.mxu0 0
        %943 = vmatmul.mubr.bf16.gmra.mrb[0].mxu0 %v830
        %v944 = vpop.f32.mrb[0].mxu0
        %v945 = vadd.f32 %v653, %v944
        %v946 = vpop.f32.mrb[0].mxu0
        %v947 = vpop.f32.mrb[0].mxu0
        %v948 = vadd.f32 %v656, %v947
        %v949 = vpop.f32.mrb[0].mxu0
        %950 = vmatprep.mubr.bf16.mxu0 0
        %951 = vmatmul.mubr.bf16.gmra.mrb[0].mxu0 %v833
        %v952 = vpop.f32.mrb[0].mxu0
        %v953 = vadd.f32 %v661, %v952
        %v954 = vpop.f32.mrb[0].mxu0
        %v955 = vpop.f32.mrb[0].mxu0
        %v956 = vadd.f32 %v664, %v955
        %v957 = vpop.f32.mrb[0].mxu0
        %958 = vmatprep.mubr.bf16.mxu0 0
        %959 = vmatmul.mubr.bf16.gmra.mrb[0].mxu0 %v836
        %v960 = vpop.f32.mrb[0].mxu0
        %v961 = vadd.f32 %v669, %v960
        %v962 = vpop.f32.mrb[0].mxu0
        %v963 = vpop.f32.mrb[0].mxu0
        %v964 = vadd.f32 %v672, %v963
        %v965 = vpop.f32.mrb[0].mxu0
        %966 = vmatprep.mubr.bf16.mxu0 0
        %967 = vmatmul.mubr.bf16.gmra.mrb[0].mxu0 %v839
        %v968 = vpop.f32.mrb[0].mxu0
        %v969 = vadd.f32 %v677, %v968
        %v970 = vpop.f32.mrb[0].mxu0
        %v971 = vpop.f32.mrb[0].mxu0
        %v972 = vadd.f32 %v680, %v971
        %v973 = vpop.f32.mrb[0].mxu0
        %974 = vmatprep.mubr.bf16.mxu0 0
        %975 = vmatmul.mubr.bf16.gmra.mrb[0].mxu0 %v842
        %v976 = vpop.f32.mrb[0].mxu0
        %v977 = vadd.f32 %v685, %v976
        %v978 = vpop.f32.mrb[0].mxu0
        %v979 = vpop.f32.mrb[0].mxu0
        %v980 = vadd.f32 %v688, %v979
        %v981 = vpop.f32.mrb[0].mxu0
        %982 = vmatprep.mubr.bf16.mxu0 0
        %983 = vmatmul.mubr.bf16.gmra.mrb[0].mxu0 %v845
        %v984 = vpop.f32.mrb[0].mxu0
        %v985 = vadd.f32 %v693, %v984
        %v986 = vpop.f32.mrb[0].mxu0
        %v987 = vpop.f32.mrb[0].mxu0
        %v988 = vadd.f32 %v696, %v987
        %v989 = vpop.f32.mrb[0].mxu0
        %990 = vmatprep.mubr.bf16.mxu0 0
        %991 = vmatmul.mubr.bf16.gmra.mrb[0].mxu0 %v848
        %v992 = vpop.f32.mrb[0].mxu0
        %v993 = vadd.f32 %v701, %v992
        %v994 = vpop.f32.mrb[0].mxu0
        %v995 = vpop.f32.mrb[0].mxu0
        %v996 = vadd.f32 %v704, %v995
        %v997 = vpop.f32.mrb[0].mxu0
        %998 = vmatprep.mubr.bf16.mxu0 0
        %999 = vmatmul.mubr.bf16.gmra.mrb[0].mxu0 %v851
        %v1000 = vpop.f32.mrb[0].mxu0
        %v1001 = vadd.f32 %v709, %v1000
        %v1002 = vpop.f32.mrb[0].mxu0
        %v1003 = vpop.f32.mrb[0].mxu0
        %v1004 = vadd.f32 %v712, %v1003
        %v1005 = vpop.f32.mrb[0].mxu0
        %1006 = vmatprep.mubr.bf16.mxu0 0
        %1007 = vmatmul.mubr.bf16.gmra.mrb[0].mxu0 %v854
        %v1008 = vpop.f32.mrb[0].mxu0
        %v1009 = vadd.f32 %v717, %v1008
        %v1010 = vpop.f32.mrb[0].mxu0
        %v1011 = vpop.f32.mrb[0].mxu0
        %v1012 = vadd.f32 %v720, %v1011
        %v1013 = vpop.f32.mrb[0].mxu0
        %1014 = vmatprep.mubr.bf16.mxu0 0
        %1015 = vmatmul.mubr.bf16.gmra.mrb[0].mxu0 %v857
        %v1016 = vpop.f32.mrb[0].mxu0
        %v1017 = vadd.f32 %v725, %v1016
        %v1018 = vpop.f32.mrb[0].mxu0
        %v1019 = vpop.f32.mrb[0].mxu0
        %v1020 = vadd.f32 %v728, %v1019
        %v1021 = vpop.f32.mrb[0].mxu0
        %1022 = vdwg.mxu0
        %s1023 = scalar_lea.vmem %s1, 16
        %v1024 = vld [vmem:[%s1023] sm:$0xf]
        %v1025 = vld [vmem:[%s1023 + $0x4] sm:$0xf]
        %v1028 = vunpack.c.l.b16 %v1024
        %v1029 = vunpack.c.l.b16 %v1025
        %v1030 = vpack.c.b16 %v1029, %v1028
        %1032 = vmatprep.subr.bf16.mxu0 0
        %1033 = vmatpush1.bf16.msra.mxu0 %v1030
        %1034 = vmatprep.subr.bf16.mxu0 0
        %1035 = vmatpush1.bf16.msra.mxu0 0
        %1036 = vmatprep.subr.bf16.mxu0 0
        %1037 = vmatpush1.bf16.msra.mxu0 0
        %1038 = vmatprep.subr.bf16.mxu0 0
        %1039 = vmatpush1.bf16.msra.mxu0 0
        %1040 = vmatprep.subr.bf16.mxu0 0
        %1041 = vmatpush1.bf16.msra.mxu0 0
        %1042 = vmatprep.subr.bf16.mxu0 0
        %1043 = vmatpush1.bf16.msra.mxu0 0
        %1044 = vmatprep.subr.bf16.mxu0 0
        %1045 = vmatpush1.bf16.msra.mxu0 0
        %1046 = vmatprep.subr.bf16.mxu0 0
        %1047 = vmatpush1.bf16.msra.mxu0 0
        %1048 = vmatprep.subr.bf16.mxu0 0
        %1049 = vmatpush1.bf16.msra.mxu0 0
        %1050 = vmatprep.subr.bf16.mxu0 0
        %1051 = vmatpush1.bf16.msra.mxu0 0
        %1052 = vmatprep.subr.bf16.mxu0 0
        %1053 = vmatpush1.bf16.msra.mxu0 0
        %1054 = vmatprep.subr.bf16.mxu0 0
        %1055 = vmatpush1.bf16.msra.mxu0 0
        %1056 = vmatprep.subr.bf16.mxu0 0
        %1057 = vmatpush1.bf16.msra.mxu0 0
        %1058 = vmatprep.subr.bf16.mxu0 0
        %1059 = vmatpush1.bf16.msra.mxu0 0
        %1060 = vmatprep.subr.bf16.mxu0 0
        %1061 = vmatpush1.bf16.msra.mxu0 0
        %1062 = vmatprep.subr.bf16.mxu0 0
        %1063 = vmatpush1.bf16.msra.mxu0 0
        %1064 = vmatprep.mubr.bf16.mxu0 0
        %1065 = vmatmul.mubr.bf16.gmra.mrb[0].mxu0 %v193
        %v1066 = vpop.f32.mrb[0].mxu0
        %v1067 = vadd.f32 0.0, %v1066
        %v1068 = vpop.f32.mrb[0].mxu0
        %v1069 = vpop.f32.mrb[0].mxu0
        %v1070 = vadd.f32 0.0, %v1069
        %v1071 = vpop.f32.mrb[0].mxu0
        %1072 = vmatprep.mubr.bf16.mxu0 0
        %1073 = vmatmul.mubr.bf16.gmra.mrb[0].mxu0 %v196
        %v1074 = vpop.f32.mrb[0].mxu0
        %v1075 = vadd.f32 0.0, %v1074
        %v1076 = vpop.f32.mrb[0].mxu0
        %v1077 = vpop.f32.mrb[0].mxu0
        %v1078 = vadd.f32 0.0, %v1077
        %v1079 = vpop.f32.mrb[0].mxu0
        %1080 = vmatprep.mubr.bf16.mxu0 0
        %1081 = vmatmul.mubr.bf16.gmra.mrb[0].mxu0 %v199
        %v1082 = vpop.f32.mrb[0].mxu0
        %v1083 = vadd.f32 0.0, %v1082
        %v1084 = vpop.f32.mrb[0].mxu0
        %v1085 = vpop.f32.mrb[0].mxu0
        %v1086 = vadd.f32 0.0, %v1085
        %v1087 = vpop.f32.mrb[0].mxu0
        %1088 = vmatprep.mubr.bf16.mxu0 0
        %1089 = vmatmul.mubr.bf16.gmra.mrb[0].mxu0 %v202
        %v1090 = vpop.f32.mrb[0].mxu0
        %v1091 = vadd.f32 0.0, %v1090
        %v1092 = vpop.f32.mrb[0].mxu0
        %v1093 = vpop.f32.mrb[0].mxu0
        %v1094 = vadd.f32 0.0, %v1093
        %v1095 = vpop.f32.mrb[0].mxu0
        %1096 = vmatprep.mubr.bf16.mxu0 0
        %1097 = vmatmul.mubr.bf16.gmra.mrb[0].mxu0 %v205
        %v1098 = vpop.f32.mrb[0].mxu0
        %v1099 = vadd.f32 0.0, %v1098
        %v1100 = vpop.f32.mrb[0].mxu0
        %v1101 = vpop.f32.mrb[0].mxu0
        %v1102 = vpop.f32.mrb[0].mxu0
        %1103 = vdwg.mxu0
        %s1104 = scalar_lea.vmem %s2, 256
        %v1105 = vld [vmem:[%s1104] sm:$0xf]
        %v1106 = vld [vmem:[%s1104 + $0x4] sm:$0xf]
        %v1107 = vld [vmem:[%s1104 + $0x8] sm:$0xf]
        %v1108 = vld [vmem:[%s1104 + $0xc] sm:$0xf]
        %v1109 = vld [vmem:[%s1104 + $0x10] sm:$0xf]
        %v1110 = vld [vmem:[%s1104 + $0x14] sm:$0xf]
        %v1111 = vld [vmem:[%s1104 + $0x18] sm:$0xf]
        %v1112 = vld [vmem:[%s1104 + $0x1c] sm:$0xf]
        %v1113 = vld [vmem:[%s1104 + $0x20] sm:$0xf]
        %v1114 = vld [vmem:[%s1104 + $0x24] sm:$0xf]
        %v1115 = vld [vmem:[%s1104 + $0x28] sm:$0xf]
        %v1116 = vld [vmem:[%s1104 + $0x2c] sm:$0xf]
        %v1117 = vld [vmem:[%s1104 + $0x30] sm:$0xf]
        %v1118 = vld [vmem:[%s1104 + $0x34] sm:$0xf]
        %v1119 = vld [vmem:[%s1104 + $0x38] sm:$0xf]
        %v1120 = vld [vmem:[%s1104 + $0x3c] sm:$0xf]
        %v1121 = vld [vmem:[%s1104 + $0x40] sm:$0xf]
        %v1122 = vld [vmem:[%s1104 + $0x44] sm:$0xf]
        %v1123 = vld [vmem:[%s1104 + $0x48] sm:$0xf]
        %v1124 = vld [vmem:[%s1104 + $0x4c] sm:$0xf]
        %v1125 = vld [vmem:[%s1104 + $0x50] sm:$0xf]
        %v1126 = vld [vmem:[%s1104 + $0x54] sm:$0xf]
        %v1127 = vld [vmem:[%s1104 + $0x58] sm:$0xf]
        %v1128 = vld [vmem:[%s1104 + $0x5c] sm:$0xf]
        %v1129 = vld [vmem:[%s1104 + $0x60] sm:$0xf]
        %v1130 = vld [vmem:[%s1104 + $0x64] sm:$0xf]
        %v1131 = vld [vmem:[%s1104 + $0x68] sm:$0xf]
        %v1132 = vld [vmem:[%s1104 + $0x6c] sm:$0xf]
        %v1133 = vld [vmem:[%s1104 + $0x70] sm:$0xf]
        %v1134 = vld [vmem:[%s1104 + $0x74] sm:$0xf]
        %v1135 = vld [vmem:[%s1104 + $0x78] sm:$0xf]
        %v1136 = vld [vmem:[%s1104 + $0x7c] sm:$0xf]
        %v1137 = vpack.c.bf16 %v1070, %v1067
        %v1138 = vpack.c.bf16 %v1078, %v1075
        %v1139 = vpack.c.bf16 %v1086, %v1083
        %v1140 = vpack.c.bf16 %v1094, %v1091
        %v1141 = vpack.c.bf16 %v1099, %v1099
        %v1174 = vunpack.c.l.b16 %v1105
        %v1175 = vunpack.c.l.b16 %v1106
        %v1176 = vunpack.c.l.b16 %v1107
        %v1177 = vunpack.c.l.b16 %v1108
        %v1178 = vunpack.c.l.b16 %v1109
        %v1179 = vunpack.c.l.b16 %v1110
        %v1180 = vunpack.c.l.b16 %v1111
        %v1181 = vunpack.c.l.b16 %v1112
        %v1182 = vunpack.c.l.b16 %v1113
        %v1183 = vunpack.c.l.b16 %v1114
        %v1184 = vunpack.c.l.b16 %v1115
        %v1185 = vunpack.c.l.b16 %v1116
        %v1186 = vunpack.c.l.b16 %v1117
        %v1187 = vunpack.c.l.b16 %v1118
        %v1188 = vunpack.c.l.b16 %v1119
        %v1189 = vunpack.c.l.b16 %v1120
        %v1190 = vunpack.c.l.b16 %v1121
        %v1191 = vunpack.c.l.b16 %v1122
        %v1192 = vunpack.c.l.b16 %v1123
        %v1193 = vunpack.c.l.b16 %v1124
        %v1194 = vunpack.c.l.b16 %v1125
        %v1195 = vunpack.c.l.b16 %v1126
        %v1196 = vunpack.c.l.b16 %v1127
        %v1197 = vunpack.c.l.b16 %v1128
        %v1198 = vunpack.c.l.b16 %v1129
        %v1199 = vunpack.c.l.b16 %v1130
        %v1200 = vunpack.c.l.b16 %v1131
        %v1201 = vunpack.c.l.b16 %v1132
        %v1202 = vunpack.c.l.b16 %v1133
        %v1203 = vunpack.c.l.b16 %v1134
        %v1204 = vunpack.c.l.b16 %v1135
        %v1205 = vunpack.c.l.b16 %v1136
        %v1206 = vpack.c.b16 %v1175, %v1174
        %v1207 = vpack.c.b16 %v1177, %v1176
        %v1208 = vpack.c.b16 %v1179, %v1178
        %v1209 = vpack.c.b16 %v1181, %v1180
        %v1210 = vpack.c.b16 %v1183, %v1182
        %v1211 = vpack.c.b16 %v1185, %v1184
        %v1212 = vpack.c.b16 %v1187, %v1186
        %v1213 = vpack.c.b16 %v1189, %v1188
        %v1214 = vpack.c.b16 %v1191, %v1190
        %v1215 = vpack.c.b16 %v1193, %v1192
        %v1216 = vpack.c.b16 %v1195, %v1194
        %v1217 = vpack.c.b16 %v1197, %v1196
        %v1218 = vpack.c.b16 %v1199, %v1198
        %v1219 = vpack.c.b16 %v1201, %v1200
        %v1220 = vpack.c.b16 %v1203, %v1202
        %v1221 = vpack.c.b16 %v1205, %v1204
        %v1223 = vsel %vm515, %v1206, 0
        %v1226 = vsel %vm515, %v1207, 0
        %v1229 = vsel %vm515, %v1208, 0
        %v1232 = vsel %vm515, %v1209, 0
        %v1235 = vsel %vm515, %v1210, 0
        %v1238 = vsel %vm515, %v1211, 0
        %v1241 = vsel %vm515, %v1212, 0
        %v1244 = vsel %vm515, %v1213, 0
        %v1247 = vsel %vm515, %v1214, 0
        %v1250 = vsel %vm515, %v1215, 0
        %v1253 = vsel %vm515, %v1216, 0
        %v1256 = vsel %vm515, %v1217, 0
        %v1259 = vsel %vm515, %v1218, 0
        %v1262 = vsel %vm515, %v1219, 0
        %v1265 = vsel %vm515, %v1220, 0
        %v1268 = vsel %vm515, %v1221, 0
        %v1271 = vand.u32 %v1141, %v566
        %1273 = vmatprep.subr.bf16.mxu0 0
        %1274 = vmatpush1.bf16.msra.mxu0 %v1137
        %1275 = vmatprep.subr.bf16.mxu0 0
        %1276 = vmatpush1.bf16.msra.mxu0 %v1138
        %1277 = vmatprep.subr.bf16.mxu0 0
        %1278 = vmatpush1.bf16.msra.mxu0 %v1139
        %1279 = vmatprep.subr.bf16.mxu0 0
        %1280 = vmatpush1.bf16.msra.mxu0 %v1140
        %1281 = vmatprep.subr.bf16.mxu0 0
        %1282 = vmatpush1.bf16.msra.mxu0 %v1271
        %1283 = vmatprep.subr.bf16.mxu0 0
        %1284 = vmatpush1.bf16.msra.mxu0 0
        %1285 = vmatprep.subr.bf16.mxu0 0
        %1286 = vmatpush1.bf16.msra.mxu0 0
        %1287 = vmatprep.subr.bf16.mxu0 0
        %1288 = vmatpush1.bf16.msra.mxu0 0
        %1289 = vmatprep.subr.bf16.mxu0 0
        %1290 = vmatpush1.bf16.msra.mxu0 0
        %1291 = vmatprep.subr.bf16.mxu0 0
        %1292 = vmatpush1.bf16.msra.mxu0 0
        %1293 = vmatprep.subr.bf16.mxu0 0
        %1294 = vmatpush1.bf16.msra.mxu0 0
        %1295 = vmatprep.subr.bf16.mxu0 0
        %1296 = vmatpush1.bf16.msra.mxu0 0
        %1297 = vmatprep.subr.bf16.mxu0 0
        %1298 = vmatpush1.bf16.msra.mxu0 0
        %1299 = vmatprep.subr.bf16.mxu0 0
        %1300 = vmatpush1.bf16.msra.mxu0 0
        %1301 = vmatprep.subr.bf16.mxu0 0
        %1302 = vmatpush1.bf16.msra.mxu0 0
        %1303 = vmatprep.subr.bf16.mxu0 0
        %1304 = vmatpush1.bf16.msra.mxu0 0
        %1305 = vmatprep.mubr.bf16.mxu0 0
        %1306 = vmatmul.mubr.bf16.gmra.mrb[0].mxu0 %v1223
        %v1307 = vpop.f32.mrb[0].mxu0
        %v1308 = vadd.f32 0.0, %v1307
        %v1309 = vpop.f32.mrb[0].mxu0
        %v1310 = vpop.f32.mrb[0].mxu0
        %v1311 = vadd.f32 0.0, %v1310
        %v1312 = vpop.f32.mrb[0].mxu0
        %1313 = vmatprep.mubr.bf16.mxu0 0
        %1314 = vmatmul.mubr.bf16.gmra.mrb[0].mxu0 %v1226
        %v1315 = vpop.f32.mrb[0].mxu0
        %v1316 = vadd.f32 0.0, %v1315
        %v1317 = vpop.f32.mrb[0].mxu0
        %v1318 = vpop.f32.mrb[0].mxu0
        %v1319 = vadd.f32 0.0, %v1318
        %v1320 = vpop.f32.mrb[0].mxu0
        %1321 = vmatprep.mubr.bf16.mxu0 0
        %1322 = vmatmul.mubr.bf16.gmra.mrb[0].mxu0 %v1229
        %v1323 = vpop.f32.mrb[0].mxu0
        %v1324 = vadd.f32 0.0, %v1323
        %v1325 = vpop.f32.mrb[0].mxu0
        %v1326 = vpop.f32.mrb[0].mxu0
        %v1327 = vadd.f32 0.0, %v1326
        %v1328 = vpop.f32.mrb[0].mxu0
        %1329 = vmatprep.mubr.bf16.mxu0 0
        %1330 = vmatmul.mubr.bf16.gmra.mrb[0].mxu0 %v1232
        %v1331 = vpop.f32.mrb[0].mxu0
        %v1332 = vadd.f32 0.0, %v1331
        %v1333 = vpop.f32.mrb[0].mxu0
        %v1334 = vpop.f32.mrb[0].mxu0
        %v1335 = vadd.f32 0.0, %v1334
        %v1336 = vpop.f32.mrb[0].mxu0
        %1337 = vmatprep.mubr.bf16.mxu0 0
        %1338 = vmatmul.mubr.bf16.gmra.mrb[0].mxu0 %v1235
        %v1339 = vpop.f32.mrb[0].mxu0
        %v1340 = vadd.f32 0.0, %v1339
        %v1341 = vpop.f32.mrb[0].mxu0
        %v1342 = vpop.f32.mrb[0].mxu0
        %v1343 = vadd.f32 0.0, %v1342
        %v1344 = vpop.f32.mrb[0].mxu0
        %1345 = vmatprep.mubr.bf16.mxu0 0
        %1346 = vmatmul.mubr.bf16.gmra.mrb[0].mxu0 %v1238
        %v1347 = vpop.f32.mrb[0].mxu0
        %v1348 = vadd.f32 0.0, %v1347
        %v1349 = vpop.f32.mrb[0].mxu0
        %v1350 = vpop.f32.mrb[0].mxu0
        %v1351 = vadd.f32 0.0, %v1350
        %v1352 = vpop.f32.mrb[0].mxu0
        %1353 = vmatprep.mubr.bf16.mxu0 0
        %1354 = vmatmul.mubr.bf16.gmra.mrb[0].mxu0 %v1241
        %v1355 = vpop.f32.mrb[0].mxu0
        %v1356 = vadd.f32 0.0, %v1355
        %v1357 = vpop.f32.mrb[0].mxu0
        %v1358 = vpop.f32.mrb[0].mxu0
        %v1359 = vadd.f32 0.0, %v1358
        %v1360 = vpop.f32.mrb[0].mxu0
        %1361 = vmatprep.mubr.bf16.mxu0 0
        %1362 = vmatmul.mubr.bf16.gmra.mrb[0].mxu0 %v1244
        %v1363 = vpop.f32.mrb[0].mxu0
        %v1364 = vadd.f32 0.0, %v1363
        %v1365 = vpop.f32.mrb[0].mxu0
        %v1366 = vpop.f32.mrb[0].mxu0
        %v1367 = vadd.f32 0.0, %v1366
        %v1368 = vpop.f32.mrb[0].mxu0
        %1369 = vmatprep.mubr.bf16.mxu0 0
        %1370 = vmatmul.mubr.bf16.gmra.mrb[0].mxu0 %v1247
        %v1371 = vpop.f32.mrb[0].mxu0
        %v1372 = vadd.f32 0.0, %v1371
        %v1373 = vpop.f32.mrb[0].mxu0
        %v1374 = vpop.f32.mrb[0].mxu0
        %v1375 = vadd.f32 0.0, %v1374
        %v1376 = vpop.f32.mrb[0].mxu0
        %1377 = vmatprep.mubr.bf16.mxu0 0
        %1378 = vmatmul.mubr.bf16.gmra.mrb[0].mxu0 %v1250
        %v1379 = vpop.f32.mrb[0].mxu0
        %v1380 = vadd.f32 0.0, %v1379
        %v1381 = vpop.f32.mrb[0].mxu0
        %v1382 = vpop.f32.mrb[0].mxu0
        %v1383 = vadd.f32 0.0, %v1382
        %v1384 = vpop.f32.mrb[0].mxu0
        %1385 = vmatprep.mubr.bf16.mxu0 0
        %1386 = vmatmul.mubr.bf16.gmra.mrb[0].mxu0 %v1253
        %v1387 = vpop.f32.mrb[0].mxu0
        %v1388 = vadd.f32 0.0, %v1387
        %v1389 = vpop.f32.mrb[0].mxu0
        %v1390 = vpop.f32.mrb[0].mxu0
        %v1391 = vadd.f32 0.0, %v1390
        %v1392 = vpop.f32.mrb[0].mxu0
        %1393 = vmatprep.mubr.bf16.mxu0 0
        %1394 = vmatmul.mubr.bf16.gmra.mrb[0].mxu0 %v1256
        %v1395 = vpop.f32.mrb[0].mxu0
        %v1396 = vadd.f32 0.0, %v1395
        %v1397 = vpop.f32.mrb[0].mxu0
        %v1398 = vpop.f32.mrb[0].mxu0
        %v1399 = vadd.f32 0.0, %v1398
        %v1400 = vpop.f32.mrb[0].mxu0
        %1401 = vmatprep.mubr.bf16.mxu0 0
        %1402 = vmatmul.mubr.bf16.gmra.mrb[0].mxu0 %v1259
        %v1403 = vpop.f32.mrb[0].mxu0
        %v1404 = vadd.f32 0.0, %v1403
        %v1405 = vpop.f32.mrb[0].mxu0
        %v1406 = vpop.f32.mrb[0].mxu0
        %v1407 = vadd.f32 0.0, %v1406
        %v1408 = vpop.f32.mrb[0].mxu0
        %1409 = vmatprep.mubr.bf16.mxu0 0
        %1410 = vmatmul.mubr.bf16.gmra.mrb[0].mxu0 %v1262
        %v1411 = vpop.f32.mrb[0].mxu0
        %v1412 = vadd.f32 0.0, %v1411
        %v1413 = vpop.f32.mrb[0].mxu0
        %v1414 = vpop.f32.mrb[0].mxu0
        %v1415 = vadd.f32 0.0, %v1414
        %v1416 = vpop.f32.mrb[0].mxu0
        %1417 = vmatprep.mubr.bf16.mxu0 0
        %1418 = vmatmul.mubr.bf16.gmra.mrb[0].mxu0 %v1265
        %v1419 = vpop.f32.mrb[0].mxu0
        %v1420 = vadd.f32 0.0, %v1419
        %v1421 = vpop.f32.mrb[0].mxu0
        %v1422 = vpop.f32.mrb[0].mxu0
        %v1423 = vadd.f32 0.0, %v1422
        %v1424 = vpop.f32.mrb[0].mxu0
        %1425 = vmatprep.mubr.bf16.mxu0 0
        %1426 = vmatmul.mubr.bf16.gmra.mrb[0].mxu0 %v1268
        %v1427 = vpop.f32.mrb[0].mxu0
        %v1428 = vadd.f32 0.0, %v1427
        %v1429 = vpop.f32.mrb[0].mxu0
        %v1430 = vpop.f32.mrb[0].mxu0
        %v1431 = vadd.f32 0.0, %v1430
        %v1432 = vpop.f32.mrb[0].mxu0
        %1433 = vdwg.mxu0
        %v1434 = vadd.f32 %v897, %v1308
        %v1435 = vadd.f32 %v900, %v1311
        %v1436 = vadd.f32 %v905, %v1316
        %v1437 = vadd.f32 %v908, %v1319
        %v1438 = vadd.f32 %v913, %v1324
        %v1439 = vadd.f32 %v916, %v1327
        %v1440 = vadd.f32 %v921, %v1332
        %v1441 = vadd.f32 %v924, %v1335
        %v1442 = vadd.f32 %v929, %v1340
        %v1443 = vadd.f32 %v932, %v1343
        %v1444 = vadd.f32 %v937, %v1348
        %v1445 = vadd.f32 %v940, %v1351
        %v1446 = vadd.f32 %v945, %v1356
        %v1447 = vadd.f32 %v948, %v1359
        %v1448 = vadd.f32 %v953, %v1364
        %v1449 = vadd.f32 %v956, %v1367
        %v1450 = vadd.f32 %v961, %v1372
        %v1451 = vadd.f32 %v964, %v1375
        %v1452 = vadd.f32 %v969, %v1380
        %v1453 = vadd.f32 %v972, %v1383
        %v1454 = vadd.f32 %v977, %v1388
        %v1455 = vadd.f32 %v980, %v1391
        %v1456 = vadd.f32 %v985, %v1396
        %v1457 = vadd.f32 %v988, %v1399
        %v1458 = vadd.f32 %v993, %v1404
        %v1459 = vadd.f32 %v996, %v1407
        %v1460 = vadd.f32 %v1001, %v1412
        %v1461 = vadd.f32 %v1004, %v1415
        %v1462 = vadd.f32 %v1009, %v1420
        %v1463 = vadd.f32 %v1012, %v1423
        %v1464 = vadd.f32 %v1017, %v1428
        %v1465 = vadd.f32 %v1020, %v1431
        %s1466 = scalar_lea.vmem %s1, 24
        %v1467 = vld [vmem:[%s1466] sm:$0xf]
        %v1468 = vld [vmem:[%s1466 + $0x4] sm:$0xf]
        %v1471 = vunpack.c.l.b16 %v1467
        %v1472 = vunpack.c.l.b16 %v1468
        %v1473 = vpack.c.b16 %v1472, %v1471
        %1475 = vmatprep.subr.bf16.mxu0 0
        %1476 = vmatpush1.bf16.msra.mxu0 %v1473
        %1477 = vmatprep.subr.bf16.mxu0 0
        %1478 = vmatpush1.bf16.msra.mxu0 0
        %1479 = vmatprep.subr.bf16.mxu0 0
        %1480 = vmatpush1.bf16.msra.mxu0 0
        %1481 = vmatprep.subr.bf16.mxu0 0
        %1482 = vmatpush1.bf16.msra.mxu0 0
        %1483 = vmatprep.subr.bf16.mxu0 0
        %1484 = vmatpush1.bf16.msra.mxu0 0
        %1485 = vmatprep.subr.bf16.mxu0 0
        %1486 = vmatpush1.bf16.msra.mxu0 0
        %1487 = vmatprep.subr.bf16.mxu0 0
        %1488 = vmatpush1.bf16.msra.mxu0 0
        %1489 = vmatprep.subr.bf16.mxu0 0
        %1490 = vmatpush1.bf16.msra.mxu0 0
        %1491 = vmatprep.subr.bf16.mxu0 0
        %1492 = vmatpush1.bf16.msra.mxu0 0
        %1493 = vmatprep.subr.bf16.mxu0 0
        %1494 = vmatpush1.bf16.msra.mxu0 0
        %1495 = vmatprep.subr.bf16.mxu0 0
        %1496 = vmatpush1.bf16.msra.mxu0 0
        %1497 = vmatprep.subr.bf16.mxu0 0
        %1498 = vmatpush1.bf16.msra.mxu0 0
        %1499 = vmatprep.subr.bf16.mxu0 0
        %1500 = vmatpush1.bf16.msra.mxu0 0
        %1501 = vmatprep.subr.bf16.mxu0 0
        %1502 = vmatpush1.bf16.msra.mxu0 0
        %1503 = vmatprep.subr.bf16.mxu0 0
        %1504 = vmatpush1.bf16.msra.mxu0 0
        %1505 = vmatprep.subr.bf16.mxu0 0
        %1506 = vmatpush1.bf16.msra.mxu0 0
        %1507 = vmatprep.mubr.bf16.mxu0 0
        %1508 = vmatmul.mubr.bf16.gmra.mrb[0].mxu0 %v193
        %v1509 = vpop.f32.mrb[0].mxu0
        %v1510 = vadd.f32 0.0, %v1509
        %v1511 = vpop.f32.mrb[0].mxu0
        %v1512 = vpop.f32.mrb[0].mxu0
        %v1513 = vadd.f32 0.0, %v1512
        %v1514 = vpop.f32.mrb[0].mxu0
        %1515 = vmatprep.mubr.bf16.mxu0 0
        %1516 = vmatmul.mubr.bf16.gmra.mrb[0].mxu0 %v196
        %v1517 = vpop.f32.mrb[0].mxu0
        %v1518 = vadd.f32 0.0, %v1517
        %v1519 = vpop.f32.mrb[0].mxu0
        %v1520 = vpop.f32.mrb[0].mxu0
        %v1521 = vadd.f32 0.0, %v1520
        %v1522 = vpop.f32.mrb[0].mxu0
        %1523 = vmatprep.mubr.bf16.mxu0 0
        %1524 = vmatmul.mubr.bf16.gmra.mrb[0].mxu0 %v199
        %v1525 = vpop.f32.mrb[0].mxu0
        %v1526 = vadd.f32 0.0, %v1525
        %v1527 = vpop.f32.mrb[0].mxu0
        %v1528 = vpop.f32.mrb[0].mxu0
        %v1529 = vadd.f32 0.0, %v1528
        %v1530 = vpop.f32.mrb[0].mxu0
        %1531 = vmatprep.mubr.bf16.mxu0 0
        %1532 = vmatmul.mubr.bf16.gmra.mrb[0].mxu0 %v202
        %v1533 = vpop.f32.mrb[0].mxu0
        %v1534 = vadd.f32 0.0, %v1533
        %v1535 = vpop.f32.mrb[0].mxu0
        %v1536 = vpop.f32.mrb[0].mxu0
        %v1537 = vadd.f32 0.0, %v1536
        %v1538 = vpop.f32.mrb[0].mxu0
        %1539 = vmatprep.mubr.bf16.mxu0 0
        %1540 = vmatmul.mubr.bf16.gmra.mrb[0].mxu0 %v205
        %v1541 = vpop.f32.mrb[0].mxu0
        %v1542 = vadd.f32 0.0, %v1541
        %v1543 = vpop.f32.mrb[0].mxu0
        %v1544 = vpop.f32.mrb[0].mxu0
        %v1545 = vpop.f32.mrb[0].mxu0
        %1546 = vdwg.mxu0
        %s1547 = scalar_lea.vmem %s2, 384
        %v1548 = vld [vmem:[%s1547] sm:$0xf]
        %v1549 = vld [vmem:[%s1547 + $0x4] sm:$0xf]
        %v1550 = vld [vmem:[%s1547 + $0x8] sm:$0xf]
        %v1551 = vld [vmem:[%s1547 + $0xc] sm:$0xf]
        %v1552 = vld [vmem:[%s1547 + $0x10] sm:$0xf]
        %v1553 = vld [vmem:[%s1547 + $0x14] sm:$0xf]
        %v1554 = vld [vmem:[%s1547 + $0x18] sm:$0xf]
        %v1555 = vld [vmem:[%s1547 + $0x1c] sm:$0xf]
        %v1556 = vld [vmem:[%s1547 + $0x20] sm:$0xf]
        %v1557 = vld [vmem:[%s1547 + $0x24] sm:$0xf]
        %v1558 = vld [vmem:[%s1547 + $0x28] sm:$0xf]
        %v1559 = vld [vmem:[%s1547 + $0x2c] sm:$0xf]
        %v1560 = vld [vmem:[%s1547 + $0x30] sm:$0xf]
        %v1561 = vld [vmem:[%s1547 + $0x34] sm:$0xf]
        %v1562 = vld [vmem:[%s1547 + $0x38] sm:$0xf]
        %v1563 = vld [vmem:[%s1547 + $0x3c] sm:$0xf]
        %v1564 = vld [vmem:[%s1547 + $0x40] sm:$0xf]
        %v1565 = vld [vmem:[%s1547 + $0x44] sm:$0xf]
        %v1566 = vld [vmem:[%s1547 + $0x48] sm:$0xf]
        %v1567 = vld [vmem:[%s1547 + $0x4c] sm:$0xf]
        %v1568 = vld [vmem:[%s1547 + $0x50] sm:$0xf]
        %v1569 = vld [vmem:[%s1547 + $0x54] sm:$0xf]
        %v1570 = vld [vmem:[%s1547 + $0x58] sm:$0xf]
        %v1571 = vld [vmem:[%s1547 + $0x5c] sm:$0xf]
        %v1572 = vld [vmem:[%s1547 + $0x60] sm:$0xf]
        %v1573 = vld [vmem:[%s1547 + $0x64] sm:$0xf]
        %v1574 = vld [vmem:[%s1547 + $0x68] sm:$0xf]
        %v1575 = vld [vmem:[%s1547 + $0x6c] sm:$0xf]
        %v1576 = vld [vmem:[%s1547 + $0x70] sm:$0xf]
        %v1577 = vld [vmem:[%s1547 + $0x74] sm:$0xf]
        %v1578 = vld [vmem:[%s1547 + $0x78] sm:$0xf]
        %v1579 = vld [vmem:[%s1547 + $0x7c] sm:$0xf]
        %v1580 = vpack.c.bf16 %v1513, %v1510
        %v1581 = vpack.c.bf16 %v1521, %v1518
        %v1582 = vpack.c.bf16 %v1529, %v1526
        %v1583 = vpack.c.bf16 %v1537, %v1534
        %v1584 = vpack.c.bf16 %v1542, %v1542
        %v1617 = vunpack.c.l.b16 %v1548
        %v1618 = vunpack.c.l.b16 %v1549
        %v1619 = vunpack.c.l.b16 %v1550
        %v1620 = vunpack.c.l.b16 %v1551
        %v1621 = vunpack.c.l.b16 %v1552
        %v1622 = vunpack.c.l.b16 %v1553
        %v1623 = vunpack.c.l.b16 %v1554
        %v1624 = vunpack.c.l.b16 %v1555
        %v1625 = vunpack.c.l.b16 %v1556
        %v1626 = vunpack.c.l.b16 %v1557
        %v1627 = vunpack.c.l.b16 %v1558
        %v1628 = vunpack.c.l.b16 %v1559
        %v1629 = vunpack.c.l.b16 %v1560
        %v1630 = vunpack.c.l.b16 %v1561
        %v1631 = vunpack.c.l.b16 %v1562
        %v1632 = vunpack.c.l.b16 %v1563
        %v1633 = vunpack.c.l.b16 %v1564
        %v1634 = vunpack.c.l.b16 %v1565
        %v1635 = vunpack.c.l.b16 %v1566
        %v1636 = vunpack.c.l.b16 %v1567
        %v1637 = vunpack.c.l.b16 %v1568
        %v1638 = vunpack.c.l.b16 %v1569
        %v1639 = vunpack.c.l.b16 %v1570
        %v1640 = vunpack.c.l.b16 %v1571
        %v1641 = vunpack.c.l.b16 %v1572
        %v1642 = vunpack.c.l.b16 %v1573
        %v1643 = vunpack.c.l.b16 %v1574
        %v1644 = vunpack.c.l.b16 %v1575
        %v1645 = vunpack.c.l.b16 %v1576
        %v1646 = vunpack.c.l.b16 %v1577
        %v1647 = vunpack.c.l.b16 %v1578
        %v1648 = vunpack.c.l.b16 %v1579
        %v1649 = vpack.c.b16 %v1618, %v1617
        %v1650 = vpack.c.b16 %v1620, %v1619
        %v1651 = vpack.c.b16 %v1622, %v1621
        %v1652 = vpack.c.b16 %v1624, %v1623
        %v1653 = vpack.c.b16 %v1626, %v1625
        %v1654 = vpack.c.b16 %v1628, %v1627
        %v1655 = vpack.c.b16 %v1630, %v1629
        %v1656 = vpack.c.b16 %v1632, %v1631
        %v1657 = vpack.c.b16 %v1634, %v1633
        %v1658 = vpack.c.b16 %v1636, %v1635
        %v1659 = vpack.c.b16 %v1638, %v1637
        %v1660 = vpack.c.b16 %v1640, %v1639
        %v1661 = vpack.c.b16 %v1642, %v1641
        %v1662 = vpack.c.b16 %v1644, %v1643
        %v1663 = vpack.c.b16 %v1646, %v1645
        %v1664 = vpack.c.b16 %v1648, %v1647
        %v1666 = vsel %vm515, %v1649, 0
        %v1669 = vsel %vm515, %v1650, 0
        %v1672 = vsel %vm515, %v1651, 0
        %v1675 = vsel %vm515, %v1652, 0
        %v1678 = vsel %vm515, %v1653, 0
        %v1681 = vsel %vm515, %v1654, 0
        %v1684 = vsel %vm515, %v1655, 0
        %v1687 = vsel %vm515, %v1656, 0
        %v1690 = vsel %vm515, %v1657, 0
        %v1693 = vsel %vm515, %v1658, 0
        %v1696 = vsel %vm515, %v1659, 0
        %v1699 = vsel %vm515, %v1660, 0
        %v1702 = vsel %vm515, %v1661, 0
        %v1705 = vsel %vm515, %v1662, 0
        %v1708 = vsel %vm515, %v1663, 0
        %v1711 = vsel %vm515, %v1664, 0
        %v1714 = vand.u32 %v1584, %v566
        %1716 = vmatprep.subr.bf16.mxu0 0
        %1717 = vmatpush1.bf16.msra.mxu0 %v1580
        %1718 = vmatprep.subr.bf16.mxu0 0
        %1719 = vmatpush1.bf16.msra.mxu0 %v1581
        %1720 = vmatprep.subr.bf16.mxu0 0
        %1721 = vmatpush1.bf16.msra.mxu0 %v1582
        %1722 = vmatprep.subr.bf16.mxu0 0
        %1723 = vmatpush1.bf16.msra.mxu0 %v1583
        %1724 = vmatprep.subr.bf16.mxu0 0
        %1725 = vmatpush1.bf16.msra.mxu0 %v1714
        %1726 = vmatprep.subr.bf16.mxu0 0
        %1727 = vmatpush1.bf16.msra.mxu0 0
        %1728 = vmatprep.subr.bf16.mxu0 0
        %1729 = vmatpush1.bf16.msra.mxu0 0
        %1730 = vmatprep.subr.bf16.mxu0 0
        %1731 = vmatpush1.bf16.msra.mxu0 0
        %1732 = vmatprep.subr.bf16.mxu0 0
        %1733 = vmatpush1.bf16.msra.mxu0 0
        %1734 = vmatprep.subr.bf16.mxu0 0
        %1735 = vmatpush1.bf16.msra.mxu0 0
        %1736 = vmatprep.subr.bf16.mxu0 0
        %1737 = vmatpush1.bf16.msra.mxu0 0
        %1738 = vmatprep.subr.bf16.mxu0 0
        %1739 = vmatpush1.bf16.msra.mxu0 0
        %1740 = vmatprep.subr.bf16.mxu0 0
        %1741 = vmatpush1.bf16.msra.mxu0 0
        %1742 = vmatprep.subr.bf16.mxu0 0
        %1743 = vmatpush1.bf16.msra.mxu0 0
        %1744 = vmatprep.subr.bf16.mxu0 0
        %1745 = vmatpush1.bf16.msra.mxu0 0
        %1746 = vmatprep.subr.bf16.mxu0 0
        %1747 = vmatpush1.bf16.msra.mxu0 0
        %1748 = vmatprep.mubr.bf16.mxu0 0
        %1749 = vmatmul.mubr.bf16.gmra.mrb[0].mxu0 %v1666
        %v1750 = vpop.f32.mrb[0].mxu0
        %v1751 = vadd.f32 0.0, %v1750
        %v1752 = vpop.f32.mrb[0].mxu0
        %v1753 = vpop.f32.mrb[0].mxu0
        %v1754 = vadd.f32 0.0, %v1753
        %v1755 = vpop.f32.mrb[0].mxu0
        %1756 = vmatprep.mubr.bf16.mxu0 0
        %1757 = vmatmul.mubr.bf16.gmra.mrb[0].mxu0 %v1669
        %v1758 = vpop.f32.mrb[0].mxu0
        %v1759 = vadd.f32 0.0, %v1758
        %v1760 = vpop.f32.mrb[0].mxu0
        %v1761 = vpop.f32.mrb[0].mxu0
        %v1762 = vadd.f32 0.0, %v1761
        %v1763 = vpop.f32.mrb[0].mxu0
        %1764 = vmatprep.mubr.bf16.mxu0 0
        %1765 = vmatmul.mubr.bf16.gmra.mrb[0].mxu0 %v1672
        %v1766 = vpop.f32.mrb[0].mxu0
        %v1767 = vadd.f32 0.0, %v1766
        %v1768 = vpop.f32.mrb[0].mxu0
        %v1769 = vpop.f32.mrb[0].mxu0
        %v1770 = vadd.f32 0.0, %v1769
        %v1771 = vpop.f32.mrb[0].mxu0
        %1772 = vmatprep.mubr.bf16.mxu0 0
        %1773 = vmatmul.mubr.bf16.gmra.mrb[0].mxu0 %v1675
        %v1774 = vpop.f32.mrb[0].mxu0
        %v1775 = vadd.f32 0.0, %v1774
        %v1776 = vpop.f32.mrb[0].mxu0
        %v1777 = vpop.f32.mrb[0].mxu0
        %v1778 = vadd.f32 0.0, %v1777
        %v1779 = vpop.f32.mrb[0].mxu0
        %1780 = vmatprep.mubr.bf16.mxu0 0
        %1781 = vmatmul.mubr.bf16.gmra.mrb[0].mxu0 %v1678
        %v1782 = vpop.f32.mrb[0].mxu0
        %v1783 = vadd.f32 0.0, %v1782
        %v1784 = vpop.f32.mrb[0].mxu0
        %v1785 = vpop.f32.mrb[0].mxu0
        %v1786 = vadd.f32 0.0, %v1785
        %v1787 = vpop.f32.mrb[0].mxu0
        %1788 = vmatprep.mubr.bf16.mxu0 0
        %1789 = vmatmul.mubr.bf16.gmra.mrb[0].mxu0 %v1681
        %v1790 = vpop.f32.mrb[0].mxu0
        %v1791 = vadd.f32 0.0, %v1790
        %v1792 = vpop.f32.mrb[0].mxu0
        %v1793 = vpop.f32.mrb[0].mxu0
        %v1794 = vadd.f32 0.0, %v1793
        %v1795 = vpop.f32.mrb[0].mxu0
        %1796 = vmatprep.mubr.bf16.mxu0 0
        %1797 = vmatmul.mubr.bf16.gmra.mrb[0].mxu0 %v1684
        %v1798 = vpop.f32.mrb[0].mxu0
        %v1799 = vadd.f32 0.0, %v1798
        %v1800 = vpop.f32.mrb[0].mxu0
        %v1801 = vpop.f32.mrb[0].mxu0
        %v1802 = vadd.f32 0.0, %v1801
        %v1803 = vpop.f32.mrb[0].mxu0
        %1804 = vmatprep.mubr.bf16.mxu0 0
        %1805 = vmatmul.mubr.bf16.gmra.mrb[0].mxu0 %v1687
        %v1806 = vpop.f32.mrb[0].mxu0
        %v1807 = vadd.f32 0.0, %v1806
        %v1808 = vpop.f32.mrb[0].mxu0
        %v1809 = vpop.f32.mrb[0].mxu0
        %v1810 = vadd.f32 0.0, %v1809
        %v1811 = vpop.f32.mrb[0].mxu0
        %1812 = vmatprep.mubr.bf16.mxu0 0
        %1813 = vmatmul.mubr.bf16.gmra.mrb[0].mxu0 %v1690
        %v1814 = vpop.f32.mrb[0].mxu0
        %v1815 = vadd.f32 0.0, %v1814
        %v1816 = vpop.f32.mrb[0].mxu0
        %v1817 = vpop.f32.mrb[0].mxu0
        %v1818 = vadd.f32 0.0, %v1817
        %v1819 = vpop.f32.mrb[0].mxu0
        %1820 = vmatprep.mubr.bf16.mxu0 0
        %1821 = vmatmul.mubr.bf16.gmra.mrb[0].mxu0 %v1693
        %v1822 = vpop.f32.mrb[0].mxu0
        %v1823 = vadd.f32 0.0, %v1822
        %v1824 = vpop.f32.mrb[0].mxu0
        %v1825 = vpop.f32.mrb[0].mxu0
        %v1826 = vadd.f32 0.0, %v1825
        %v1827 = vpop.f32.mrb[0].mxu0
        %1828 = vmatprep.mubr.bf16.mxu0 0
        %1829 = vmatmul.mubr.bf16.gmra.mrb[0].mxu0 %v1696
        %v1830 = vpop.f32.mrb[0].mxu0
        %v1831 = vadd.f32 0.0, %v1830
        %v1832 = vpop.f32.mrb[0].mxu0
        %v1833 = vpop.f32.mrb[0].mxu0
        %v1834 = vadd.f32 0.0, %v1833
        %v1835 = vpop.f32.mrb[0].mxu0
        %1836 = vmatprep.mubr.bf16.mxu0 0
        %1837 = vmatmul.mubr.bf16.gmra.mrb[0].mxu0 %v1699
        %v1838 = vpop.f32.mrb[0].mxu0
        %v1839 = vadd.f32 0.0, %v1838
        %v1840 = vpop.f32.mrb[0].mxu0
        %v1841 = vpop.f32.mrb[0].mxu0
        %v1842 = vadd.f32 0.0, %v1841
        %v1843 = vpop.f32.mrb[0].mxu0
        %1844 = vmatprep.mubr.bf16.mxu0 0
        %1845 = vmatmul.mubr.bf16.gmra.mrb[0].mxu0 %v1702
        %v1846 = vpop.f32.mrb[0].mxu0
        %v1847 = vadd.f32 0.0, %v1846
        %v1848 = vpop.f32.mrb[0].mxu0
        %v1849 = vpop.f32.mrb[0].mxu0
        %v1850 = vadd.f32 0.0, %v1849
        %v1851 = vpop.f32.mrb[0].mxu0
        %1852 = vmatprep.mubr.bf16.mxu0 0
        %1853 = vmatmul.mubr.bf16.gmra.mrb[0].mxu0 %v1705
        %v1854 = vpop.f32.mrb[0].mxu0
        %v1855 = vadd.f32 0.0, %v1854
        %v1856 = vpop.f32.mrb[0].mxu0
        %v1857 = vpop.f32.mrb[0].mxu0
        %v1858 = vadd.f32 0.0, %v1857
        %v1859 = vpop.f32.mrb[0].mxu0
        %1860 = vmatprep.mubr.bf16.mxu0 0
        %1861 = vmatmul.mubr.bf16.gmra.mrb[0].mxu0 %v1708
        %v1862 = vpop.f32.mrb[0].mxu0
        %v1863 = vadd.f32 0.0, %v1862
        %v1864 = vpop.f32.mrb[0].mxu0
        %v1865 = vpop.f32.mrb[0].mxu0
        %v1866 = vadd.f32 0.0, %v1865
        %v1867 = vpop.f32.mrb[0].mxu0
        %1868 = vmatprep.mubr.bf16.mxu0 0
        %1869 = vmatmul.mubr.bf16.gmra.mrb[0].mxu0 %v1711
        %v1870 = vpop.f32.mrb[0].mxu0
        %v1871 = vadd.f32 0.0, %v1870
        %v1872 = vpop.f32.mrb[0].mxu0
        %v1873 = vpop.f32.mrb[0].mxu0
        %v1874 = vadd.f32 0.0, %v1873
        %v1875 = vpop.f32.mrb[0].mxu0
        %1876 = vdwg.mxu0
        %v1877 = vadd.f32 %v1434, %v1751
        %v1878 = vadd.f32 %v1435, %v1754
        %v1879 = vadd.f32 %v1436, %v1759
        %v1880 = vadd.f32 %v1437, %v1762
        %v1881 = vadd.f32 %v1438, %v1767
        %v1882 = vadd.f32 %v1439, %v1770
        %v1883 = vadd.f32 %v1440, %v1775
        %v1884 = vadd.f32 %v1441, %v1778
        %v1885 = vadd.f32 %v1442, %v1783
        %v1886 = vadd.f32 %v1443, %v1786
        %v1887 = vadd.f32 %v1444, %v1791
        %v1888 = vadd.f32 %v1445, %v1794
        %v1889 = vadd.f32 %v1446, %v1799
        %v1890 = vadd.f32 %v1447, %v1802
        %v1891 = vadd.f32 %v1448, %v1807
        %v1892 = vadd.f32 %v1449, %v1810
        %v1893 = vadd.f32 %v1450, %v1815
        %v1894 = vadd.f32 %v1451, %v1818
        %v1895 = vadd.f32 %v1452, %v1823
        %v1896 = vadd.f32 %v1453, %v1826
        %v1897 = vadd.f32 %v1454, %v1831
        %v1898 = vadd.f32 %v1455, %v1834
        %v1899 = vadd.f32 %v1456, %v1839
        %v1900 = vadd.f32 %v1457, %v1842
        %v1901 = vadd.f32 %v1458, %v1847
        %v1902 = vadd.f32 %v1459, %v1850
        %v1903 = vadd.f32 %v1460, %v1855
        %v1904 = vadd.f32 %v1461, %v1858
        %v1905 = vadd.f32 %v1462, %v1863
        %v1906 = vadd.f32 %v1463, %v1866
        %v1907 = vadd.f32 %v1464, %v1871
        %v1908 = vadd.f32 %v1465, %v1874
        %vm1909 = vcmask 261120
        %1910 = vst.msk [vmem:[%s163] sm:$0xff] %vm1909, %v1877
        %1911 = vst.msk [vmem:[%s163 + $0x8] sm:$0xff] %vm1909, %v1878
        %1912 = vst.msk [vmem:[%s163 + $0x10] sm:$0xff] %vm1909, %v1879
        %1913 = vst.msk [vmem:[%s163 + $0x18] sm:$0xff] %vm1909, %v1880
        %1914 = vst.msk [vmem:[%s163 + $0x20] sm:$0xff] %vm1909, %v1881
        %1915 = vst.msk [vmem:[%s163 + $0x28] sm:$0xff] %vm1909, %v1882
        %1916 = vst.msk [vmem:[%s163 + $0x30] sm:$0xff] %vm1909, %v1883
        %1917 = vst.msk [vmem:[%s163 + $0x38] sm:$0xff] %vm1909, %v1884
        %1918 = vst.msk [vmem:[%s163 + $0x40] sm:$0xff] %vm1909, %v1885
        %1919 = vst.msk [vmem:[%s163 + $0x48] sm:$0xff] %vm1909, %v1886
        %1920 = vst.msk [vmem:[%s163 + $0x50] sm:$0xff] %vm1909, %v1887
        %1921 = vst.msk [vmem:[%s163 + $0x58] sm:$0xff] %vm1909, %v1888
        %1922 = vst.msk [vmem:[%s163 + $0x60] sm:$0xff] %vm1909, %v1889
        %1923 = vst.msk [vmem:[%s163 + $0x68] sm:$0xff] %vm1909, %v1890
        %1924 = vst.msk [vmem:[%s163 + $0x70] sm:$0xff] %vm1909, %v1891
        %1925 = vst.msk [vmem:[%s163 + $0x78] sm:$0xff] %vm1909, %v1892
        %1926 = vst.msk [vmem:[%s163 + $0x80] sm:$0xff] %vm1909, %v1893
        %1927 = vst.msk [vmem:[%s163 + $0x88] sm:$0xff] %vm1909, %v1894
        %1928 = vst.msk [vmem:[%s163 + $0x90] sm:$0xff] %vm1909, %v1895
        %1929 = vst.msk [vmem:[%s163 + $0x98] sm:$0xff] %vm1909, %v1896
        %1930 = vst.msk [vmem:[%s163 + $0xa0] sm:$0xff] %vm1909, %v1897
        %1931 = vst.msk [vmem:[%s163 + $0xa8] sm:$0xff] %vm1909, %v1898
        %1932 = vst.msk [vmem:[%s163 + $0xb0] sm:$0xff] %vm1909, %v1899
        %1933 = vst.msk [vmem:[%s163 + $0xb8] sm:$0xff] %vm1909, %v1900
        %1934 = vst.msk [vmem:[%s163 + $0xc0] sm:$0xff] %vm1909, %v1901
        %1935 = vst.msk [vmem:[%s163 + $0xc8] sm:$0xff] %vm1909, %v1902
        %1936 = vst.msk [vmem:[%s163 + $0xd0] sm:$0xff] %vm1909, %v1903
        %1937 = vst.msk [vmem:[%s163 + $0xd8] sm:$0xff] %vm1909, %v1904
        %1938 = vst.msk [vmem:[%s163 + $0xe0] sm:$0xff] %vm1909, %v1905
        %1939 = vst.msk [vmem:[%s163 + $0xe8] sm:$0xff] %vm1909, %v1906
        %1940 = vst.msk [vmem:[%s163 + $0xf0] sm:$0xff] %vm1909, %v1907
        %1941 = vst.msk [vmem:[%s163 + $0xf8] sm:$0xff] %vm1909, %v1908
        %s1942 = sand.u32 %s93, 1
        %s1943 = scalar_lea.sflag [#allocation3], %s1942
        %s1944 = sand.u32 %s93, 1
        %s1945 = smul.addr %s1944, 256
        %s1946 = scalar_lea.vmem [#allocation2], %s1945
        // Predicated region
        $region33: #{uplg_query_forward.1} parent=31 // pred_check
          %p1947 = pneg %p103
        $region34: #{uplg_query_forward.1} parent=31 // pred_check_branch
          %1949 = sbr.rel (%p1947) target = $region36
        $region35: #{uplg_query_forward.1} parent=31 // pred_region
          %s1951 = ssub.s32 4096, 4096
          %1952 = vsyncadd %s1943, %s1951
          %s1953 = smul.addr %s17, 32
          %s1954 = smul.addr %s1953, 128
          %s1955 = scalar_lea.hbm %s3, %s1954
          %s1956 = sshll.u32 %s1946, 4
          %s1957 = int_to_ptr.vmem [resolvable:$true] %s1956
          %1962 = dma.vmem_to_hbm [thread:$0]  %s1957, 4096, %s1955, %s1943, 128, 128, 8
        $region36: #{uplg_query_forward.1} parent=31 // pred_fallthru
          _
      $region32: #{uplg_query_forward.1} parent=5 // pred_fallthru
        _
      %p1963 = scmp.le.s32.totalorder 2, %s12
      // Predicated region
      $region37: #{uplg_query_forward.1} parent=5 // pred_check
        %p1964 = pneg %p1963
      $region38: #{uplg_query_forward.1} parent=5 // pred_check_branch
        %1966 = sbr.rel (%p1964) target = $region40
      $region39: #{uplg_query_forward.1} parent=5 // pred_region
        %s1967 = ssub.s32 %s12, 2
        // Predicated region
        $region41: #{uplg_query_forward.1} parent=39 // pred_check
          %p1968 = pneg %p109
        $region42: #{uplg_query_forward.1} parent=39 // pred_check_branch
          %1970 = sbr.rel (%p1968) target = $region44
        $region43: #{uplg_query_forward.1} parent=39 // pred_region
          %s1971 = sand.u32 %s94, 1
          %s1972 = scalar_lea.sflag [#allocation3], %s1971
          %s1973 = sand.u32 %s94, 1
          %s1974 = smul.addr %s1973, 256
          %s1975 = scalar_lea.vmem [#allocation2], %s1974
          %1976 = dma.done %s1972, 4096
        $region44: #{uplg_query_forward.1} parent=39 // pred_fallthru
          _
      $region40: #{uplg_query_forward.1} parent=5 // pred_fallthru
        _
    $region6: #{uplg_query_forward.1} parent=1 // loop_footer
      %s16 = sadd.s32 1, %s12
    $region7: #{uplg_query_forward.1} parent=1 // loop_footer_branch
      %11 = sbr.rel target = $region3
    $region8: #{uplg_query_forward.1} parent=1 // loop_exit
      _
    %1977 = vsyncpa [#allocation3], 1
    %s1978 = scalar_lea.sflag [#allocation3], 1
    %1979 = vsyncpa %s1978, 1

</llo_original>
